<compile_context>
chip_gen: v6e
topology: v6e:2x2x1
jax: 0.10.0
libtpu: 0.0.40
codegen_flags: <defaults>
</compile_context>

<pallas_src>
import jax
import jax.numpy as jnp
import numpy as np
from jax.experimental import pallas as pl
from jax.experimental.pallas import tpu as pltpu

block_size = 8
n_embed = 32
n_head = 4
head_size = n_embed // n_head   # 8


def block_kernel(x_rep_ref, mask_ref, wqkv_ref, wproj_ref, bproj_ref,
                 w1_ref, b1_ref, w2_ref, b2_ref, o_ref):
    D = head_size

    x_rep = x_rep_ref[...]          # (H, N, C): activations broadcast per head
    x = x_rep_ref[0]                # (N, C)   : single copy, for residual / FFN

    # Fused, batched Q/K/V projection: ONE batched contraction over all heads.
    # (scale already folded into the Q columns host-side).
    qkv = jnp.einsum('hnc,hcd->hnd', x_rep, wqkv_ref[...],
                     preferred_element_type=jnp.float32)          # (H, N, 3D)
    q = qkv[:, :, :D]
    k = qkv[:, :, D:2 * D]
    v = qkv[:, :, 2 * D:]

    # Scores for every (head, row, col) at once.  Rows/cols are (b, t)
    # flattened; the additive mask removes future positions AND cross-batch
    # pairs, so no per-batch loop or batch axis is needed.
    s = jnp.einsum('hnd,hmd->hnm', q, k,
                   preferred_element_type=jnp.float32)            # (H, N, N)
    s = s + mask_ref[...]                                         # bcast over heads

    # One numerically-stable softmax over all heads/rows; exact normalization.
    m = jnp.max(s, axis=-1, keepdims=True)
    p = jnp.exp(s - m)
    p = p / jnp.sum(p, axis=-1, keepdims=True)

    o = jnp.einsum('hnm,hmd->hnd', p, v,
                   preferred_element_type=jnp.float32)            # (H, N, D)

    # Head concat + output projection as one batched contraction + head-sum:
    #   sa[n, c] = sum_h sum_d o[h, n, d] * wproj[h*D + d, c]
    sa = jnp.einsum('hnd,hdc->hnc', o, wproj_ref[...],
                    preferred_element_type=jnp.float32)           # (H, N, C)
    sa = jnp.sum(sa, axis=0) + bproj_ref[...]                     # (N, C)

    x1 = x + sa                                                   # first residual

    # Feed-forward: Linear(C, 4C) -> ReLU -> Linear(4C, C).
    h1 = jnp.dot(x1, w1_ref[...],
                 preferred_element_type=jnp.float32) + b1_ref[...]
    h1 = jnp.maximum(h1, 0.0)
    ff = jnp.dot(h1, w2_ref[...],
                 preferred_element_type=jnp.float32) + b2_ref[...]

    o_ref[...] = (x1 + ff).astype(o_ref.dtype)                    # second residual


def transformer_block(x, packed_params):
    """x: (B, T, C); packed_params from pack_params()."""
    B, T, C = x.shape
    wqkv, wproj3, bproj, w1, b1, w2, b2 = packed_params
    H, D = n_head, head_size
    N = B * T

    # Wrapper-side layout prep (free / negligible): flatten rows, broadcast the
    # activation slab along a leading head axis for the batched QKV matmul.
    x2d = x.reshape(N, C)
    x_rep = jnp.broadcast_to(x2d[None], (H, N, C))

    # Additive mask: 0 where (same batch AND t >= s), else -inf.
    idx = np.arange(N)
    bi, ti = idx // T, idx % T
    allowed = (bi[:, None] == bi[None, :]) & (ti[:, None] >= ti[None, :])
    mask_add = jnp.asarray(np.where(allowed, 0.0, -np.inf), dtype=jnp.float32)

    # Advisory cost estimate (scheduling hint only).
    flops = 2 * (H * N * C * (3 * D)       # fused QKV
                 + 2 * H * N * N * D       # scores + P@V
                 + H * N * D * C           # output projection
                 + N * C * (4 * C)         # FFN 1
                 + N * (4 * C) * C)        # FFN 2
    bytes_accessed = 4 * int(x_rep.size + mask_add.size + wqkv.size + wproj3.size
                             + bproj.size + w1.size + b1.size + w2.size + b2.size
                             + N * C)
    cost = pl.CostEstimate(flops=flops, transcendentals=H * N * N,
                           bytes_accessed=bytes_accessed)

    vmem = lambda: pl.BlockSpec(memory_space=pltpu.MemorySpace.VMEM)

    y2d = pl.pallas_call(
        block_kernel,
        out_shape=jax.ShapeDtypeStruct((N, C), x.dtype),
        in_specs=[vmem() for _ in range(9)],   # everything VMEM-resident, single step
        out_specs=vmem(),
        cost_estimate=cost,
    )(x_rep, mask_add, wqkv, wproj3, bproj, w1, b1, w2, b2)

    return y2d.reshape(B, T, C)


def pack_params(raw_params):
    """One-time host-side weight prep: fold attention scale into wq, fuse Q/K/V
    per head, and reshape the output projection into per-head (D, C) slabs."""
    wq, wk, wv, wproj, bproj, w1, b1, w2, b2 = raw_params
    scale = float(n_embed) ** -0.5            # PyTorch scales by C**-0.5 (C = n_embed)
    wqkv = jnp.concatenate([wq * scale, wk, wv], axis=-1)      # (H, C, 3D)
    wproj3 = wproj.reshape(n_head, head_size, n_embed)         # (H, D, C)
    return (wqkv, wproj3, bproj, w1, b1, w2, b2)


def reference_block(x, raw_params):
    """Pure-JAX reference replicating the PyTorch forward pass exactly."""
    wq, wk, wv, wproj, bproj, w1, b1, w2, b2 = raw_params
    B, T, C = x.shape
    scale = float(n_embed) ** -0.5

    q = jnp.einsum('btc,hcd->bhtd', x, wq)
    k = jnp.einsum('btc,hcd->bhtd', x, wk)
    v = jnp.einsum('btc,hcd->bhtd', x, wv)
    wei = jnp.einsum('bhtd,bhsd->bhts', q, k) * scale
    tril = jnp.tril(jnp.ones((T, T), bool))
    wei = jnp.where(tril[None, None], wei, -jnp.inf)
    wei = jax.nn.softmax(wei, axis=-1)
    out = jnp.einsum('bhts,bhsd->bhtd', wei, v)
    cat = out.transpose(0, 2, 1, 3).reshape(B, T, C)    # concat heads along last dim
    sa = cat @ wproj + bproj[0]
    x1 = x + sa
    hmid = jnp.maximum(x1 @ w1 + b1[0], 0.0)
    ff = hmid @ w2 + b2[0]
    return x1 + ff


def init_params(key):
    H, C, D = n_head, n_embed, head_size
    ks = jax.random.split(key, 9)
    s = 0.1
    wq = s * jax.random.normal(ks[0], (H, C, D), jnp.float32)
    wk = s * jax.random.normal(ks[1], (H, C, D), jnp.float32)
    wv = s * jax.random.normal(ks[2], (H, C, D), jnp.float32)
    wproj = s * jax.random.normal(ks[3], (C, C), jnp.float32)        # (H*D, C), x @ W form
    bproj = s * jax.random.normal(ks[4], (1, C), jnp.float32)
    w1 = s * jax.random.normal(ks[5], (C, 4 * C), jnp.float32)
    b1 = s * jax.random.normal(ks[6], (1, 4 * C), jnp.float32)
    w2 = s * jax.random.normal(ks[7], (4 * C, C), jnp.float32)
    b2 = s * jax.random.normal(ks[8], (1, C), jnp.float32)
    return (wq, wk, wv, wproj, bproj, w1, b1, w2, b2)


if __name__ == "__main__":
    key = jax.random.PRNGKey(0)
    k_x, k_p = jax.random.split(key)

    B, T, C = 2, block_size, n_embed          # x: (2, 8, 32)
    x = jax.random.normal(k_x, (B, T, C), jnp.float32)
    raw_params = init_params(k_p)
    packed_params = pack_params(raw_params)

    y = jax.block_until_ready(transformer_block(x, packed_params))
    y_ref = jax.block_until_ready(reference_block(x, raw_params))

    np.testing.assert_allclose(np.asarray(y), np.asarray(y_ref), rtol=5e-3, atol=5e-3)

    print("KERNEL_OK")
</pallas_src>

<mosaic_0001>
module attributes {stable_mosaic.version = 11 : i64} {
  func.func @block_kernel(%arg0: memref<4x16x32xf32, #tpu.memory_space<vmem>>, %arg1: memref<16x16xf32, #tpu.memory_space<vmem>>, %arg2: memref<4x32x24xf32, #tpu.memory_space<vmem>>, %arg3: memref<4x8x32xf32, #tpu.memory_space<vmem>>, %arg4: memref<1x32xf32, #tpu.memory_space<vmem>>, %arg5: memref<32x128xf32, #tpu.memory_space<vmem>>, %arg6: memref<1x128xf32, #tpu.memory_space<vmem>>, %arg7: memref<128x32xf32, #tpu.memory_space<vmem>>, %arg8: memref<1x32xf32, #tpu.memory_space<vmem>>, %arg9: memref<16x32xf32, #tpu.memory_space<vmem>>) attributes {dimension_semantics = [], scalar_prefetch = 0 : i64, scratch_operands = 0 : i64, tpu.core_type = #tpu.core_type<tc>} {
    %c0 = arith.constant 0 : index
    %c0_0 = arith.constant 0 : index
    %c0_1 = arith.constant 0 : index
    %0 = vector.load %arg0[%c0, %c0_0, %c0_1] : memref<4x16x32xf32, #tpu.memory_space<vmem>>, vector<4x16x32xf32>
    %c0_2 = arith.constant 0 : index
    %c0_3 = arith.constant 0 : index
    %c0_4 = arith.constant 0 : index
    %1 = vector.load %arg0[%c0_2, %c0_3, %c0_4] : memref<4x16x32xf32, #tpu.memory_space<vmem>>, vector<1x16x32xf32>
    %2 = vector.shape_cast %1 : vector<1x16x32xf32> to vector<16x32xf32>
    %c0_5 = arith.constant 0 : index
    %c0_6 = arith.constant 0 : index
    %c0_7 = arith.constant 0 : index
    %3 = vector.load %arg2[%c0_5, %c0_6, %c0_7] : memref<4x32x24xf32, #tpu.memory_space<vmem>>, vector<4x32x24xf32>
    "tpu.trace_start"() <{level = 10 : i32, message = "hnc,hcd->hnd"}> : () -> ()
    %cst = arith.constant dense<0.000000e+00> : vector<4x16x24xf32>
    %4 = tpu.matmul %0, %3, %cst {dimension_numbers = #tpu.dot_dimension_numbers<[2], [1], [1], [2], [0, 0, 0, 1, 1, 2], [0], [0]>} : vector<4x16x32xf32>, vector<4x32x24xf32>, vector<4x16x24xf32> -> vector<4x16x24xf32>
    "tpu.trace_stop"() : () -> ()
    %5 = vector.extract_strided_slice %4 {offsets = [0, 0, 0], sizes = [4, 16, 8], strides = [1, 1, 1]} : vector<4x16x24xf32> to vector<4x16x8xf32>
    %6 = vector.extract_strided_slice %4 {offsets = [0, 0, 8], sizes = [4, 16, 8], strides = [1, 1, 1]} : vector<4x16x24xf32> to vector<4x16x8xf32>
    %7 = vector.extract_strided_slice %4 {offsets = [0, 0, 16], sizes = [4, 16, 8], strides = [1, 1, 1]} : vector<4x16x24xf32> to vector<4x16x8xf32>
    "tpu.trace_start"() <{level = 10 : i32, message = "hnd,hmd->hnm"}> : () -> ()
    %cst_8 = arith.constant dense<0.000000e+00> : vector<4x16x16xf32>
    %8 = tpu.matmul %5, %6, %cst_8 {dimension_numbers = #tpu.dot_dimension_numbers<[2], [2], [1], [1], [0, 0, 0, 1, 1, 1], [0], [0]>} : vector<4x16x8xf32>, vector<4x16x8xf32>, vector<4x16x16xf32> -> vector<4x16x16xf32>
    "tpu.trace_stop"() : () -> ()
    %c0_9 = arith.constant 0 : index
    %c0_10 = arith.constant 0 : index
    %9 = vector.load %arg1[%c0_9, %c0_10] : memref<16x16xf32, #tpu.memory_space<vmem>>, vector<16x16xf32>
    %10 = vector.shape_cast %9 : vector<16x16xf32> to vector<1x16x16xf32>
    %11 = vector.broadcast %10 : vector<1x16x16xf32> to vector<4x16x16xf32>
    %12 = arith.addf %8, %11 : vector<4x16x16xf32>
    %cst_11 = arith.constant dense<0xFF800000> : vector<4x16xf32>
    %13 = vector.multi_reduction <maximumf>, %12, %cst_11 [2] : vector<4x16x16xf32> to vector<4x16xf32>
    %14 = vector.shape_cast %13 : vector<4x16xf32> to vector<4x16x1xf32>
    %15 = vector.broadcast %14 : vector<4x16x1xf32> to vector<4x16x16xf32>
    %16 = arith.subf %12, %15 : vector<4x16x16xf32>
    %17 = math.exp %16 : vector<4x16x16xf32>
    %cst_12 = arith.constant dense<0.000000e+00> : vector<4x16xf32>
    %18 = vector.multi_reduction <add>, %17, %cst_12 [2] : vector<4x16x16xf32> to vector<4x16xf32>
    %19 = vector.shape_cast %18 : vector<4x16xf32> to vector<4x16x1xf32>
    %20 = vector.broadcast %19 : vector<4x16x1xf32> to vector<4x16x16xf32>
    %21 = arith.divf %17, %20 : vector<4x16x16xf32>
    "tpu.trace_start"() <{level = 10 : i32, message = "hnm,hmd->hnd"}> : () -> ()
    %cst_13 = arith.constant dense<0.000000e+00> : vector<4x16x8xf32>
    %22 = tpu.matmul %21, %7, %cst_13 {dimension_numbers = #tpu.dot_dimension_numbers<[2], [1], [1], [2], [0, 0, 0, 1, 1, 2], [0], [0]>} : vector<4x16x16xf32>, vector<4x16x8xf32>, vector<4x16x8xf32> -> vector<4x16x8xf32>
    "tpu.trace_stop"() : () -> ()
    %c0_14 = arith.constant 0 : index
    %c0_15 = arith.constant 0 : index
    %c0_16 = arith.constant 0 : index
    %23 = vector.load %arg3[%c0_14, %c0_15, %c0_16] : memref<4x8x32xf32, #tpu.memory_space<vmem>>, vector<4x8x32xf32>
    "tpu.trace_start"() <{level = 10 : i32, message = "hnd,hdc->hnc"}> : () -> ()
    %cst_17 = arith.constant dense<0.000000e+00> : vector<4x16x32xf32>
    %24 = tpu.matmul %22, %23, %cst_17 {dimension_numbers = #tpu.dot_dimension_numbers<[2], [1], [1], [2], [0, 0, 0, 1, 1, 2], [0], [0]>} : vector<4x16x8xf32>, vector<4x8x32xf32>, vector<4x16x32xf32> -> vector<4x16x32xf32>
    "tpu.trace_stop"() : () -> ()
    %cst_18 = arith.constant dense<0.000000e+00> : vector<16x32xf32>
    %25 = vector.multi_reduction <add>, %24, %cst_18 [0] : vector<4x16x32xf32> to vector<16x32xf32>
    %c0_19 = arith.constant 0 : index
    %c0_20 = arith.constant 0 : index
    %26 = vector.load %arg4[%c0_19, %c0_20] : memref<1x32xf32, #tpu.memory_space<vmem>>, vector<1x32xf32>
    %27 = vector.broadcast %26 : vector<1x32xf32> to vector<16x32xf32>
    %28 = arith.addf %25, %27 : vector<16x32xf32>
    %29 = arith.addf %2, %28 : vector<16x32xf32>
    %c0_21 = arith.constant 0 : index
    %c0_22 = arith.constant 0 : index
    %30 = vector.load %arg5[%c0_21, %c0_22] : memref<32x128xf32, #tpu.memory_space<vmem>>, vector<32x128xf32>
    %cst_23 = arith.constant dense<0.000000e+00> : vector<16x128xf32>
    %31 = tpu.matmul %29, %30, %cst_23 {dimension_numbers = #tpu.dot_dimension_numbers<[1], [0], [0], [1], [0, 0, 1, 1], [], []>} : vector<16x32xf32>, vector<32x128xf32>, vector<16x128xf32> -> vector<16x128xf32>
    %c0_24 = arith.constant 0 : index
    %c0_25 = arith.constant 0 : index
    %32 = vector.load %arg6[%c0_24, %c0_25] : memref<1x128xf32, #tpu.memory_space<vmem>>, vector<1x128xf32>
    %33 = vector.broadcast %32 : vector<1x128xf32> to vector<16x128xf32>
    %34 = arith.addf %31, %33 : vector<16x128xf32>
    %cst_26 = arith.constant 0.000000e+00 : f32
    %35 = vector.broadcast %cst_26 : f32 to vector<16x128xf32>
    %36 = arith.maximumf %34, %35 : vector<16x128xf32>
    %c0_27 = arith.constant 0 : index
    %c0_28 = arith.constant 0 : index
    %37 = vector.load %arg7[%c0_27, %c0_28] : memref<128x32xf32, #tpu.memory_space<vmem>>, vector<128x32xf32>
    %cst_29 = arith.constant dense<0.000000e+00> : vector<16x32xf32>
    %38 = tpu.matmul %36, %37, %cst_29 {dimension_numbers = #tpu.dot_dimension_numbers<[1], [0], [0], [1], [0, 0, 1, 1], [], []>} : vector<16x128xf32>, vector<128x32xf32>, vector<16x32xf32> -> vector<16x32xf32>
    %c0_30 = arith.constant 0 : index
    %c0_31 = arith.constant 0 : index
    %39 = vector.load %arg8[%c0_30, %c0_31] : memref<1x32xf32, #tpu.memory_space<vmem>>, vector<1x32xf32>
    %40 = vector.broadcast %39 : vector<1x32xf32> to vector<16x32xf32>
    %41 = arith.addf %38, %40 : vector<16x32xf32>
    %42 = arith.addf %29, %41 : vector<16x32xf32>
    %c0_32 = arith.constant 0 : index
    %c0_33 = arith.constant 0 : index
    %43 = vector.load %arg9[%c0_32, %c0_33] : memref<16x32xf32, #tpu.memory_space<vmem>>, vector<16x32xf32>
    tpu.vector_store %arg9[%c0_32, %c0_33], %42 {strides = array<i32>} : memref<16x32xf32, #tpu.memory_space<vmem>>, vector<16x32xf32>,
    return
  }
}

</mosaic_0001>

<llo_original>
// kernel: tpu_custom_call.1
$region0: #{tpu_custom_call.1}
  #allocation0 [shape = 'u32[]', space=smem, size = 0x4, offset = 0x4, fixed_abs, tag = 'smem constant byte address 0x4 - core index']
  #allocation1 [shape = 'u32[144,128]{1,0:T(1,128)}', space=vmem, size = 0x12000, scoped, tag = 'internal scratch']
  %s0 = inlined_call_operand.vmem [shape: f32[4,16,32], index: 0, kind: input, shape index: {}]
  %s1 = inlined_call_operand.vmem [shape: f32[16,16], index: 1, kind: input, shape index: {}]
  %s2 = inlined_call_operand.vmem [shape: f32[4,32,24], index: 2, kind: input, shape index: {}]
  %s3 = inlined_call_operand.vmem [shape: f32[4,8,32], index: 3, kind: input, shape index: {}]
  %s4 = inlined_call_operand.vmem [shape: f32[1,32], index: 4, kind: input, shape index: {}]
  %s5 = inlined_call_operand.vmem [shape: f32[32,128], index: 5, kind: input, shape index: {}]
  %s6 = inlined_call_operand.vmem [shape: f32[1,128], index: 6, kind: input, shape index: {}]
  %s7 = inlined_call_operand.vmem [shape: f32[128,32], index: 7, kind: input, shape index: {}]
  %s8 = inlined_call_operand.vmem [shape: f32[1,32], index: 8, kind: input, shape index: {}]
  %s9 = inlined_call_operand.hbm [shape: f32[16,32], index: 9, kind: output, shape index: {}]
  %s10 = sld [smem:[#allocation0]]
  $region46: #{tpu_custom_call.1} parent=0
    _
  %s12 = ssub.s32 1, %s10
  %s13 = scalar_select 0, %s12, %s10
  $region1: #{tpu_custom_call.1} parent=0
    #allocation2 [shape = 'u8[8192]{0}', space=vmem, size = 0x2000, scoped, tag = 'output window, operand 0, single buffered']
    #allocation3 [shape = 's32[1]{0}', space=sflag, size = 0x4, scoped, tag = 'scoped memory for tpu_custom_call.1']
    %14 = vsyncpa [#allocation3], 0
    // Predicated region
    $region2: #{tpu_custom_call.1} parent=1 // pred_check
      _
    $region3: #{tpu_custom_call.1} parent=1 // pred_check_branch
      %16 = sbr.rel (0) target = $region5
    $region4: #{tpu_custom_call.1} parent=1 // pred_region
      _
    $region5: #{tpu_custom_call.1} parent=1 // pred_fallthru
      _
    // Predicated region
    $region6: #{tpu_custom_call.1} parent=1 // pred_check
      _
    $region7: #{tpu_custom_call.1} parent=1 // pred_check_branch
      %18 = sbr.rel (0) target = $region9
    $region8: #{tpu_custom_call.1} parent=1 // pred_region
      _
    $region9: #{tpu_custom_call.1} parent=1 // pred_fallthru
      _
    // Predicated region
    $region10: #{tpu_custom_call.1} parent=1 // pred_check
      _
    $region11: #{tpu_custom_call.1} parent=1 // pred_check_branch
      %20 = sbr.rel (0) target = $region13
    $region12: #{tpu_custom_call.1} parent=1 // pred_region
      _
    $region13: #{tpu_custom_call.1} parent=1 // pred_fallthru
      _
    // Predicated region
    $region14: #{tpu_custom_call.1} parent=1 // pred_check
      _
    $region15: #{tpu_custom_call.1} parent=1 // pred_check_branch
      %22 = sbr.rel (0) target = $region17
    $region16: #{tpu_custom_call.1} parent=1 // pred_region
      _
    $region17: #{tpu_custom_call.1} parent=1 // pred_fallthru
      _
    // Predicated region
    $region18: #{tpu_custom_call.1} parent=1 // pred_check
      _
    $region19: #{tpu_custom_call.1} parent=1 // pred_check_branch
      %24 = sbr.rel (0) target = $region21
    $region20: #{tpu_custom_call.1} parent=1 // pred_region
      _
    $region21: #{tpu_custom_call.1} parent=1 // pred_fallthru
      _
    // Predicated region
    $region22: #{tpu_custom_call.1} parent=1 // pred_check
      _
    $region23: #{tpu_custom_call.1} parent=1 // pred_check_branch
      %26 = sbr.rel (0) target = $region25
    $region24: #{tpu_custom_call.1} parent=1 // pred_region
      _
    $region25: #{tpu_custom_call.1} parent=1 // pred_fallthru
      _
    // Predicated region
    $region26: #{tpu_custom_call.1} parent=1 // pred_check
      _
    $region27: #{tpu_custom_call.1} parent=1 // pred_check_branch
      %28 = sbr.rel (0) target = $region29
    $region28: #{tpu_custom_call.1} parent=1 // pred_region
      _
    $region29: #{tpu_custom_call.1} parent=1 // pred_fallthru
      _
    // Predicated region
    $region30: #{tpu_custom_call.1} parent=1 // pred_check
      _
    $region31: #{tpu_custom_call.1} parent=1 // pred_check_branch
      %30 = sbr.rel (0) target = $region33
    $region32: #{tpu_custom_call.1} parent=1 // pred_region
      _
    $region33: #{tpu_custom_call.1} parent=1 // pred_fallthru
      _
    // Predicated region
    $region34: #{tpu_custom_call.1} parent=1 // pred_check
      _
    $region35: #{tpu_custom_call.1} parent=1 // pred_check_branch
      %32 = sbr.rel (0) target = $region37
    $region36: #{tpu_custom_call.1} parent=1 // pred_region
      _
    $region37: #{tpu_custom_call.1} parent=1 // pred_fallthru
      _
    %v33 = vld [vmem:[%s0] sm:$0xff]
    %v34 = vld [vmem:[%s0 + $0x8] sm:$0xff]
    %v35 = vld [vmem:[%s0 + $0x10] sm:$0xff]
    %v36 = vld [vmem:[%s0 + $0x18] sm:$0xff]
    %v37 = vld [vmem:[%s0 + $0x20] sm:$0xff]
    %v38 = vld [vmem:[%s0 + $0x28] sm:$0xff]
    %v39 = vld [vmem:[%s0 + $0x30] sm:$0xff]
    %v40 = vld [vmem:[%s0 + $0x38] sm:$0xff]
    %v41 = vld [vmem:[%s2] sm:$0xff]
    %v42 = vld [vmem:[%s2 + $0x8] sm:$0xff]
    %v43 = vld [vmem:[%s2 + $0x10] sm:$0xff]
    %v44 = vld [vmem:[%s2 + $0x18] sm:$0xff]
    %v45 = vld [vmem:[%s2 + $0x20] sm:$0xff]
    %v46 = vld [vmem:[%s2 + $0x28] sm:$0xff]
    %v47 = vld [vmem:[%s2 + $0x30] sm:$0xff]
    %v48 = vld [vmem:[%s2 + $0x38] sm:$0xff]
    %v49 = vld [vmem:[%s2 + $0x40] sm:$0xff]
    %v50 = vld [vmem:[%s2 + $0x48] sm:$0xff]
    %v51 = vld [vmem:[%s2 + $0x50] sm:$0xff]
    %v52 = vld [vmem:[%s2 + $0x58] sm:$0xff]
    %v53 = vld [vmem:[%s2 + $0x60] sm:$0xff]
    %v54 = vld [vmem:[%s2 + $0x68] sm:$0xff]
    %v55 = vld [vmem:[%s2 + $0x70] sm:$0xff]
    %v56 = vld [vmem:[%s2 + $0x78] sm:$0xff]
    %vm57 = vcmask 261120
    %v59 = vsel %vm57, %v33, 0
    %v62 = vsel %vm57, %v34, 0
    %64 = vmatprep.subr.mxu0 0.0
    %65 = vmatpush1.msra.mxu0 0.0
    %66 = vmatprep.subr.mxu0 0.0
    %67 = vmatpush1.msra.mxu0 0.0
    %68 = vmatprep.subr.mxu0 0.0
    %69 = vmatpush1.msra.mxu0 0.0
    %70 = vmatprep.subr.mxu0 0.0
    %71 = vmatpush1.msra.mxu0 0.0
    %72 = vmatprep.subr.mxu0 0.0
    %73 = vmatpush1.msra.mxu0 0.0
    %74 = vmatprep.subr.mxu0 0.0
    %75 = vmatpush1.msra.mxu0 0.0
    %76 = vmatprep.subr.mxu0 0.0
    %77 = vmatpush1.msra.mxu0 0.0
    %78 = vmatprep.subr.mxu0 0.0
    %79 = vmatpush1.msra.mxu0 0.0
    %80 = vmatprep.subr.mxu0 0.0
    %81 = vmatpush1.msra.mxu0 0.0
    %82 = vmatprep.subr.mxu0 0.0
    %83 = vmatpush1.msra.mxu0 0.0
    %84 = vmatprep.subr.mxu0 0.0
    %85 = vmatpush1.msra.mxu0 0.0
    %86 = vmatprep.subr.mxu0 0.0
    %87 = vmatpush1.msra.mxu0 0.0
    %88 = vmatprep.subr.mxu0 0.0
    %89 = vmatpush1.msra.mxu0 %v44
    %90 = vmatprep.subr.mxu0 0.0
    %91 = vmatpush1.msra.mxu0 %v43
    %92 = vmatprep.subr.mxu0 0.0
    %93 = vmatpush1.msra.mxu0 %v42
    %94 = vmatprep.subr.mxu0 0.0
    %95 = vmatpush1.msra.mxu0 %v41
    %96 = vmatprep.subr.mxu0 0.0
    %97 = vmatpush2.msra.mxu0 0.0
    %98 = vmatprep.subr.mxu0 0.0
    %99 = vmatpush2.msra.mxu0 0.0
    %100 = vmatprep.subr.mxu0 0.0
    %101 = vmatpush2.msra.mxu0 0.0
    %102 = vmatprep.subr.mxu0 0.0
    %103 = vmatpush2.msra.mxu0 0.0
    %104 = vmatprep.subr.mxu0 0.0
    %105 = vmatpush2.msra.mxu0 0.0
    %106 = vmatprep.subr.mxu0 0.0
    %107 = vmatpush2.msra.mxu0 0.0
    %108 = vmatprep.subr.mxu0 0.0
    %109 = vmatpush2.msra.mxu0 0.0
    %110 = vmatprep.subr.mxu0 0.0
    %111 = vmatpush2.msra.mxu0 0.0
    %112 = vmatprep.subr.mxu0 0.0
    %113 = vmatpush2.msra.mxu0 0.0
    %114 = vmatprep.subr.mxu0 0.0
    %115 = vmatpush2.msra.mxu0 0.0
    %116 = vmatprep.subr.mxu0 0.0
    %117 = vmatpush2.msra.mxu0 0.0
    %118 = vmatprep.subr.mxu0 0.0
    %119 = vmatpush2.msra.mxu0 0.0
    %120 = vmatprep.subr.mxu0 0.0
    %121 = vmatpush2.msra.mxu0 0.0
    %122 = vmatprep.subr.mxu0 0.0
    %123 = vmatpush2.msra.mxu0 0.0
    %124 = vmatprep.subr.mxu0 0.0
    %125 = vmatpush2.msra.mxu0 0.0
    %126 = vmatprep.subr.mxu0 0.0
    %127 = vmatpush2.msra.mxu0 0.0
    %128 = vmatprep.mubr.f32.mxu0 0.0
    %129 = vmatmul.mubr.f32.gmra.mxu0 %v59
    %v130 = vpop.f32.mrf.mxu0
    %v131 = vadd.f32 0.0, %v130
    %v132 = vpop.f32.mrf.mxu0
    %133 = vmatprep.mubr.f32.mxu0 0.0
    %134 = vmatmul.mubr.f32.gmra.mxu0 %v62
    %v135 = vpop.f32.mrf.mxu0
    %v136 = vadd.f32 0.0, %v135
    %v137 = vpop.f32.mrf.mxu0
    %138 = vdwg.mxu0
    %v140 = vsel %vm57, %v35, 0
    %v143 = vsel %vm57, %v36, 0
    %145 = vmatprep.subr.mxu0 0.0
    %146 = vmatpush1.msra.mxu0 0.0
    %147 = vmatprep.subr.mxu0 0.0
    %148 = vmatpush1.msra.mxu0 0.0
    %149 = vmatprep.subr.mxu0 0.0
    %150 = vmatpush1.msra.mxu0 0.0
    %151 = vmatprep.subr.mxu0 0.0
    %152 = vmatpush1.msra.mxu0 0.0
    %153 = vmatprep.subr.mxu0 0.0
    %154 = vmatpush1.msra.mxu0 0.0
    %155 = vmatprep.subr.mxu0 0.0
    %156 = vmatpush1.msra.mxu0 0.0
    %157 = vmatprep.subr.mxu0 0.0
    %158 = vmatpush1.msra.mxu0 0.0
    %159 = vmatprep.subr.mxu0 0.0
    %160 = vmatpush1.msra.mxu0 0.0
    %161 = vmatprep.subr.mxu0 0.0
    %162 = vmatpush1.msra.mxu0 0.0
    %163 = vmatprep.subr.mxu0 0.0
    %164 = vmatpush1.msra.mxu0 0.0
    %165 = vmatprep.subr.mxu0 0.0
    %166 = vmatpush1.msra.mxu0 0.0
    %167 = vmatprep.subr.mxu0 0.0
    %168 = vmatpush1.msra.mxu0 0.0
    %169 = vmatprep.subr.mxu0 0.0
    %170 = vmatpush1.msra.mxu0 %v48
    %171 = vmatprep.subr.mxu0 0.0
    %172 = vmatpush1.msra.mxu0 %v47
    %173 = vmatprep.subr.mxu0 0.0
    %174 = vmatpush1.msra.mxu0 %v46
    %175 = vmatprep.subr.mxu0 0.0
    %176 = vmatpush1.msra.mxu0 %v45
    %177 = vmatprep.subr.mxu0 0.0
    %178 = vmatpush2.msra.mxu0 0.0
    %179 = vmatprep.subr.mxu0 0.0
    %180 = vmatpush2.msra.mxu0 0.0
    %181 = vmatprep.subr.mxu0 0.0
    %182 = vmatpush2.msra.mxu0 0.0
    %183 = vmatprep.subr.mxu0 0.0
    %184 = vmatpush2.msra.mxu0 0.0
    %185 = vmatprep.subr.mxu0 0.0
    %186 = vmatpush2.msra.mxu0 0.0
    %187 = vmatprep.subr.mxu0 0.0
    %188 = vmatpush2.msra.mxu0 0.0
    %189 = vmatprep.subr.mxu0 0.0
    %190 = vmatpush2.msra.mxu0 0.0
    %191 = vmatprep.subr.mxu0 0.0
    %192 = vmatpush2.msra.mxu0 0.0
    %193 = vmatprep.subr.mxu0 0.0
    %194 = vmatpush2.msra.mxu0 0.0
    %195 = vmatprep.subr.mxu0 0.0
    %196 = vmatpush2.msra.mxu0 0.0
    %197 = vmatprep.subr.mxu0 0.0
    %198 = vmatpush2.msra.mxu0 0.0
    %199 = vmatprep.subr.mxu0 0.0
    %200 = vmatpush2.msra.mxu0 0.0
    %201 = vmatprep.subr.mxu0 0.0
    %202 = vmatpush2.msra.mxu0 0.0
    %203 = vmatprep.subr.mxu0 0.0
    %204 = vmatpush2.msra.mxu0 0.0
    %205 = vmatprep.subr.mxu0 0.0
    %206 = vmatpush2.msra.mxu0 0.0
    %207 = vmatprep.subr.mxu0 0.0
    %208 = vmatpush2.msra.mxu0 0.0
    %209 = vmatprep.mubr.f32.mxu0 0.0
    %210 = vmatmul.mubr.f32.gmra.mxu0 %v140
    %v211 = vpop.f32.mrf.mxu0
    %v212 = vadd.f32 0.0, %v211
    %v213 = vpop.f32.mrf.mxu0
    %214 = vmatprep.mubr.f32.mxu0 0.0
    %215 = vmatmul.mubr.f32.gmra.mxu0 %v143
    %v216 = vpop.f32.mrf.mxu0
    %v217 = vadd.f32 0.0, %v216
    %v218 = vpop.f32.mrf.mxu0
    %219 = vdwg.mxu0
    %v221 = vsel %vm57, %v37, 0
    %v224 = vsel %vm57, %v38, 0
    %226 = vmatprep.subr.mxu0 0.0
    %227 = vmatpush1.msra.mxu0 0.0
    %228 = vmatprep.subr.mxu0 0.0
    %229 = vmatpush1.msra.mxu0 0.0
    %230 = vmatprep.subr.mxu0 0.0
    %231 = vmatpush1.msra.mxu0 0.0
    %232 = vmatprep.subr.mxu0 0.0
    %233 = vmatpush1.msra.mxu0 0.0
    %234 = vmatprep.subr.mxu0 0.0
    %235 = vmatpush1.msra.mxu0 0.0
    %236 = vmatprep.subr.mxu0 0.0
    %237 = vmatpush1.msra.mxu0 0.0
    %238 = vmatprep.subr.mxu0 0.0
    %239 = vmatpush1.msra.mxu0 0.0
    %240 = vmatprep.subr.mxu0 0.0
    %241 = vmatpush1.msra.mxu0 0.0
    %242 = vmatprep.subr.mxu0 0.0
    %243 = vmatpush1.msra.mxu0 0.0
    %244 = vmatprep.subr.mxu0 0.0
    %245 = vmatpush1.msra.mxu0 0.0
    %246 = vmatprep.subr.mxu0 0.0
    %247 = vmatpush1.msra.mxu0 0.0
    %248 = vmatprep.subr.mxu0 0.0
    %249 = vmatpush1.msra.mxu0 0.0
    %250 = vmatprep.subr.mxu0 0.0
    %251 = vmatpush1.msra.mxu0 %v52
    %252 = vmatprep.subr.mxu0 0.0
    %253 = vmatpush1.msra.mxu0 %v51
    %254 = vmatprep.subr.mxu0 0.0
    %255 = vmatpush1.msra.mxu0 %v50
    %256 = vmatprep.subr.mxu0 0.0
    %257 = vmatpush1.msra.mxu0 %v49
    %258 = vmatprep.subr.mxu0 0.0
    %259 = vmatpush2.msra.mxu0 0.0
    %260 = vmatprep.subr.mxu0 0.0
    %261 = vmatpush2.msra.mxu0 0.0
    %262 = vmatprep.subr.mxu0 0.0
    %263 = vmatpush2.msra.mxu0 0.0
    %264 = vmatprep.subr.mxu0 0.0
    %265 = vmatpush2.msra.mxu0 0.0
    %266 = vmatprep.subr.mxu0 0.0
    %267 = vmatpush2.msra.mxu0 0.0
    %268 = vmatprep.subr.mxu0 0.0
    %269 = vmatpush2.msra.mxu0 0.0
    %270 = vmatprep.subr.mxu0 0.0
    %271 = vmatpush2.msra.mxu0 0.0
    %272 = vmatprep.subr.mxu0 0.0
    %273 = vmatpush2.msra.mxu0 0.0
    %274 = vmatprep.subr.mxu0 0.0
    %275 = vmatpush2.msra.mxu0 0.0
    %276 = vmatprep.subr.mxu0 0.0
    %277 = vmatpush2.msra.mxu0 0.0
    %278 = vmatprep.subr.mxu0 0.0
    %279 = vmatpush2.msra.mxu0 0.0
    %280 = vmatprep.subr.mxu0 0.0
    %281 = vmatpush2.msra.mxu0 0.0
    %282 = vmatprep.subr.mxu0 0.0
    %283 = vmatpush2.msra.mxu0 0.0
    %284 = vmatprep.subr.mxu0 0.0
    %285 = vmatpush2.msra.mxu0 0.0
    %286 = vmatprep.subr.mxu0 0.0
    %287 = vmatpush2.msra.mxu0 0.0
    %288 = vmatprep.subr.mxu0 0.0
    %289 = vmatpush2.msra.mxu0 0.0
    %290 = vmatprep.mubr.f32.mxu0 0.0
    %291 = vmatmul.mubr.f32.gmra.mxu0 %v221
    %v292 = vpop.f32.mrf.mxu0
    %v293 = vadd.f32 0.0, %v292
    %v294 = vpop.f32.mrf.mxu0
    %295 = vmatprep.mubr.f32.mxu0 0.0
    %296 = vmatmul.mubr.f32.gmra.mxu0 %v224
    %v297 = vpop.f32.mrf.mxu0
    %v298 = vadd.f32 0.0, %v297
    %v299 = vpop.f32.mrf.mxu0
    %300 = vdwg.mxu0
    %v302 = vsel %vm57, %v39, 0
    %v305 = vsel %vm57, %v40, 0
    %307 = vmatprep.subr.mxu0 0.0
    %308 = vmatpush1.msra.mxu0 0.0
    %309 = vmatprep.subr.mxu0 0.0
    %310 = vmatpush1.msra.mxu0 0.0
    %311 = vmatprep.subr.mxu0 0.0
    %312 = vmatpush1.msra.mxu0 0.0
    %313 = vmatprep.subr.mxu0 0.0
    %314 = vmatpush1.msra.mxu0 0.0
    %315 = vmatprep.subr.mxu0 0.0
    %316 = vmatpush1.msra.mxu0 0.0
    %317 = vmatprep.subr.mxu0 0.0
    %318 = vmatpush1.msra.mxu0 0.0
    %319 = vmatprep.subr.mxu0 0.0
    %320 = vmatpush1.msra.mxu0 0.0
    %321 = vmatprep.subr.mxu0 0.0
    %322 = vmatpush1.msra.mxu0 0.0
    %323 = vmatprep.subr.mxu0 0.0
    %324 = vmatpush1.msra.mxu0 0.0
    %325 = vmatprep.subr.mxu0 0.0
    %326 = vmatpush1.msra.mxu0 0.0
    %327 = vmatprep.subr.mxu0 0.0
    %328 = vmatpush1.msra.mxu0 0.0
    %329 = vmatprep.subr.mxu0 0.0
    %330 = vmatpush1.msra.mxu0 0.0
    %331 = vmatprep.subr.mxu0 0.0
    %332 = vmatpush1.msra.mxu0 %v56
    %333 = vmatprep.subr.mxu0 0.0
    %334 = vmatpush1.msra.mxu0 %v55
    %335 = vmatprep.subr.mxu0 0.0
    %336 = vmatpush1.msra.mxu0 %v54
    %337 = vmatprep.subr.mxu0 0.0
    %338 = vmatpush1.msra.mxu0 %v53
    %339 = vmatprep.subr.mxu0 0.0
    %340 = vmatpush2.msra.mxu0 0.0
    %341 = vmatprep.subr.mxu0 0.0
    %342 = vmatpush2.msra.mxu0 0.0
    %343 = vmatprep.subr.mxu0 0.0
    %344 = vmatpush2.msra.mxu0 0.0
    %345 = vmatprep.subr.mxu0 0.0
    %346 = vmatpush2.msra.mxu0 0.0
    %347 = vmatprep.subr.mxu0 0.0
    %348 = vmatpush2.msra.mxu0 0.0
    %349 = vmatprep.subr.mxu0 0.0
    %350 = vmatpush2.msra.mxu0 0.0
    %351 = vmatprep.subr.mxu0 0.0
    %352 = vmatpush2.msra.mxu0 0.0
    %353 = vmatprep.subr.mxu0 0.0
    %354 = vmatpush2.msra.mxu0 0.0
    %355 = vmatprep.subr.mxu0 0.0
    %356 = vmatpush2.msra.mxu0 0.0
    %357 = vmatprep.subr.mxu0 0.0
    %358 = vmatpush2.msra.mxu0 0.0
    %359 = vmatprep.subr.mxu0 0.0
    %360 = vmatpush2.msra.mxu0 0.0
    %361 = vmatprep.subr.mxu0 0.0
    %362 = vmatpush2.msra.mxu0 0.0
    %363 = vmatprep.subr.mxu0 0.0
    %364 = vmatpush2.msra.mxu0 0.0
    %365 = vmatprep.subr.mxu0 0.0
    %366 = vmatpush2.msra.mxu0 0.0
    %367 = vmatprep.subr.mxu0 0.0
    %368 = vmatpush2.msra.mxu0 0.0
    %369 = vmatprep.subr.mxu0 0.0
    %370 = vmatpush2.msra.mxu0 0.0
    %371 = vmatprep.mubr.f32.mxu0 0.0
    %372 = vmatmul.mubr.f32.gmra.mxu0 %v302
    %v373 = vpop.f32.mrf.mxu0
    %v374 = vadd.f32 0.0, %v373
    %v375 = vpop.f32.mrf.mxu0
    %376 = vmatprep.mubr.f32.mxu0 0.0
    %377 = vmatmul.mubr.f32.gmra.mxu0 %v305
    %v378 = vpop.f32.mrf.mxu0
    %v379 = vadd.f32 0.0, %v378
    %v380 = vpop.f32.mrf.mxu0
    %381 = vdwg.mxu0
    %v382 = vld [vmem:[%s1] sm:$0xff]
    %v383 = vld [vmem:[%s1 + $0x8] sm:$0xff]
    %386 = vrot.lane.b32.xlu0 %v131, 120
    %v387 = vpop.permute.xlu0 %386
    %388 = vrot.lane.b32.xlu0 %v136, 120
    %v389 = vpop.permute.xlu0 %388
    %vm390 = vcmask 64512
    %v391 = vsel %vm390, %v131, 0
    %v393 = vsel %vm390, %v136, 0
    %v395 = vsel %vm390, %v387, 0
    %v397 = vsel %vm390, %v389, 0
    %399 = vmatprep.subr.mxu0 0.0
    %400 = vmatpush1.xpose.msra.mxu0 0.0
    %401 = vmatprep.subr.mxu0 0.0
    %402 = vmatpush1.xpose.msra.mxu0 0.0
    %403 = vmatprep.subr.mxu0 0.0
    %404 = vmatpush1.xpose.msra.mxu0 0.0
    %405 = vmatprep.subr.mxu0 0.0
    %406 = vmatpush1.xpose.msra.mxu0 0.0
    %407 = vmatprep.subr.mxu0 0.0
    %408 = vmatpush1.xpose.msra.mxu0 0.0
    %409 = vmatprep.subr.mxu0 0.0
    %410 = vmatpush1.xpose.msra.mxu0 0.0
    %411 = vmatprep.subr.mxu0 0.0
    %412 = vmatpush1.xpose.msra.mxu0 0.0
    %413 = vmatprep.subr.mxu0 0.0
    %414 = vmatpush1.xpose.msra.mxu0 0.0
    %415 = vmatprep.subr.mxu0 0.0
    %416 = vmatpush1.xpose.msra.mxu0 0.0
    %417 = vmatprep.subr.mxu0 0.0
    %418 = vmatpush1.xpose.msra.mxu0 0.0
    %419 = vmatprep.subr.mxu0 0.0
    %420 = vmatpush1.xpose.msra.mxu0 0.0
    %421 = vmatprep.subr.mxu0 0.0
    %422 = vmatpush1.xpose.msra.mxu0 0.0
    %423 = vmatprep.subr.mxu0 0.0
    %424 = vmatpush1.xpose.msra.mxu0 0.0
    %425 = vmatprep.subr.mxu0 0.0
    %426 = vmatpush1.xpose.msra.mxu0 0.0
    %427 = vmatprep.subr.mxu0 0.0
    %428 = vmatpush1.xpose.msra.mxu0 %v397
    %429 = vmatprep.subr.mxu0 0.0
    %430 = vmatpush1.xpose.msra.mxu0 %v395
    %431 = vmatprep.subr.mxu0 0.0
    %432 = vmatpush2.xpose.msra.mxu0 0.0
    %433 = vmatprep.subr.mxu0 0.0
    %434 = vmatpush2.xpose.msra.mxu0 0.0
    %435 = vmatprep.subr.mxu0 0.0
    %436 = vmatpush2.xpose.msra.mxu0 0.0
    %437 = vmatprep.subr.mxu0 0.0
    %438 = vmatpush2.xpose.msra.mxu0 0.0
    %439 = vmatprep.subr.mxu0 0.0
    %440 = vmatpush2.xpose.msra.mxu0 0.0
    %441 = vmatprep.subr.mxu0 0.0
    %442 = vmatpush2.xpose.msra.mxu0 0.0
    %443 = vmatprep.subr.mxu0 0.0
    %444 = vmatpush2.xpose.msra.mxu0 0.0
    %445 = vmatprep.subr.mxu0 0.0
    %446 = vmatpush2.xpose.msra.mxu0 0.0
    %447 = vmatprep.subr.mxu0 0.0
    %448 = vmatpush2.xpose.msra.mxu0 0.0
    %449 = vmatprep.subr.mxu0 0.0
    %450 = vmatpush2.xpose.msra.mxu0 0.0
    %451 = vmatprep.subr.mxu0 0.0
    %452 = vmatpush2.xpose.msra.mxu0 0.0
    %453 = vmatprep.subr.mxu0 0.0
    %454 = vmatpush2.xpose.msra.mxu0 0.0
    %455 = vmatprep.subr.mxu0 0.0
    %456 = vmatpush2.xpose.msra.mxu0 0.0
    %457 = vmatprep.subr.mxu0 0.0
    %458 = vmatpush2.xpose.msra.mxu0 0.0
    %459 = vmatprep.subr.mxu0 0.0
    %460 = vmatpush2.xpose.msra.mxu0 0.0
    %461 = vmatprep.subr.mxu0 0.0
    %462 = vmatpush2.xpose.msra.mxu0 0.0
    %463 = vmatprep.mubr.f32.mxu0 0.0
    %464 = vmatmul.mubr.f32.gmra.mxu0 %v391
    %v465 = vpop.f32.mrf.mxu0
    %v466 = vadd.f32 %v382, %v465
    %v467 = vpop.f32.mrf.mxu0
    %468 = vmatprep.mubr.f32.mxu0 0.0
    %469 = vmatmul.mubr.f32.gmra.mxu0 %v393
    %v470 = vpop.f32.mrf.mxu0
    %v471 = vadd.f32 %v383, %v470
    %v472 = vpop.f32.mrf.mxu0
    %473 = vdwg.mxu0
    %476 = vrot.lane.b32.xlu0 %v212, 120
    %v477 = vpop.permute.xlu0 %476
    %478 = vrot.lane.b32.xlu0 %v217, 120
    %v479 = vpop.permute.xlu0 %478
    %v480 = vsel %vm390, %v212, 0
    %v482 = vsel %vm390, %v217, 0
    %v484 = vsel %vm390, %v477, 0
    %v486 = vsel %vm390, %v479, 0
    %488 = vmatprep.subr.mxu0 0.0
    %489 = vmatpush1.xpose.msra.mxu0 0.0
    %490 = vmatprep.subr.mxu0 0.0
    %491 = vmatpush1.xpose.msra.mxu0 0.0
    %492 = vmatprep.subr.mxu0 0.0
    %493 = vmatpush1.xpose.msra.mxu0 0.0
    %494 = vmatprep.subr.mxu0 0.0
    %495 = vmatpush1.xpose.msra.mxu0 0.0
    %496 = vmatprep.subr.mxu0 0.0
    %497 = vmatpush1.xpose.msra.mxu0 0.0
    %498 = vmatprep.subr.mxu0 0.0
    %499 = vmatpush1.xpose.msra.mxu0 0.0
    %500 = vmatprep.subr.mxu0 0.0
    %501 = vmatpush1.xpose.msra.mxu0 0.0
    %502 = vmatprep.subr.mxu0 0.0
    %503 = vmatpush1.xpose.msra.mxu0 0.0
    %504 = vmatprep.subr.mxu0 0.0
    %505 = vmatpush1.xpose.msra.mxu0 0.0
    %506 = vmatprep.subr.mxu0 0.0
    %507 = vmatpush1.xpose.msra.mxu0 0.0
    %508 = vmatprep.subr.mxu0 0.0
    %509 = vmatpush1.xpose.msra.mxu0 0.0
    %510 = vmatprep.subr.mxu0 0.0
    %511 = vmatpush1.xpose.msra.mxu0 0.0
    %512 = vmatprep.subr.mxu0 0.0
    %513 = vmatpush1.xpose.msra.mxu0 0.0
    %514 = vmatprep.subr.mxu0 0.0
    %515 = vmatpush1.xpose.msra.mxu0 0.0
    %516 = vmatprep.subr.mxu0 0.0
    %517 = vmatpush1.xpose.msra.mxu0 %v486
    %518 = vmatprep.subr.mxu0 0.0
    %519 = vmatpush1.xpose.msra.mxu0 %v484
    %520 = vmatprep.subr.mxu0 0.0
    %521 = vmatpush2.xpose.msra.mxu0 0.0
    %522 = vmatprep.subr.mxu0 0.0
    %523 = vmatpush2.xpose.msra.mxu0 0.0
    %524 = vmatprep.subr.mxu0 0.0
    %525 = vmatpush2.xpose.msra.mxu0 0.0
    %526 = vmatprep.subr.mxu0 0.0
    %527 = vmatpush2.xpose.msra.mxu0 0.0
    %528 = vmatprep.subr.mxu0 0.0
    %529 = vmatpush2.xpose.msra.mxu0 0.0
    %530 = vmatprep.subr.mxu0 0.0
    %531 = vmatpush2.xpose.msra.mxu0 0.0
    %532 = vmatprep.subr.mxu0 0.0
    %533 = vmatpush2.xpose.msra.mxu0 0.0
    %534 = vmatprep.subr.mxu0 0.0
    %535 = vmatpush2.xpose.msra.mxu0 0.0
    %536 = vmatprep.subr.mxu0 0.0
    %537 = vmatpush2.xpose.msra.mxu0 0.0
    %538 = vmatprep.subr.mxu0 0.0
    %539 = vmatpush2.xpose.msra.mxu0 0.0
    %540 = vmatprep.subr.mxu0 0.0
    %541 = vmatpush2.xpose.msra.mxu0 0.0
    %542 = vmatprep.subr.mxu0 0.0
    %543 = vmatpush2.xpose.msra.mxu0 0.0
    %544 = vmatprep.subr.mxu0 0.0
    %545 = vmatpush2.xpose.msra.mxu0 0.0
    %546 = vmatprep.subr.mxu0 0.0
    %547 = vmatpush2.xpose.msra.mxu0 0.0
    %548 = vmatprep.subr.mxu0 0.0
    %549 = vmatpush2.xpose.msra.mxu0 0.0
    %550 = vmatprep.subr.mxu0 0.0
    %551 = vmatpush2.xpose.msra.mxu0 0.0
    %552 = vmatprep.mubr.f32.mxu0 0.0
    %553 = vmatmul.mubr.f32.gmra.mxu0 %v480
    %v554 = vpop.f32.mrf.mxu0
    %v555 = vadd.f32 %v382, %v554
    %v556 = vpop.f32.mrf.mxu0
    %557 = vmatprep.mubr.f32.mxu0 0.0
    %558 = vmatmul.mubr.f32.gmra.mxu0 %v482
    %v559 = vpop.f32.mrf.mxu0
    %v560 = vadd.f32 %v383, %v559
    %v561 = vpop.f32.mrf.mxu0
    %562 = vdwg.mxu0
    %565 = vrot.lane.b32.xlu0 %v293, 120
    %v566 = vpop.permute.xlu0 %565
    %567 = vrot.lane.b32.xlu0 %v298, 120
    %v568 = vpop.permute.xlu0 %567
    %v569 = vsel %vm390, %v293, 0
    %v571 = vsel %vm390, %v298, 0
    %v573 = vsel %vm390, %v566, 0
    %v575 = vsel %vm390, %v568, 0
    %577 = vmatprep.subr.mxu0 0.0
    %578 = vmatpush1.xpose.msra.mxu0 0.0
    %579 = vmatprep.subr.mxu0 0.0
    %580 = vmatpush1.xpose.msra.mxu0 0.0
    %581 = vmatprep.subr.mxu0 0.0
    %582 = vmatpush1.xpose.msra.mxu0 0.0
    %583 = vmatprep.subr.mxu0 0.0
    %584 = vmatpush1.xpose.msra.mxu0 0.0
    %585 = vmatprep.subr.mxu0 0.0
    %586 = vmatpush1.xpose.msra.mxu0 0.0
    %587 = vmatprep.subr.mxu0 0.0
    %588 = vmatpush1.xpose.msra.mxu0 0.0
    %589 = vmatprep.subr.mxu0 0.0
    %590 = vmatpush1.xpose.msra.mxu0 0.0
    %591 = vmatprep.subr.mxu0 0.0
    %592 = vmatpush1.xpose.msra.mxu0 0.0
    %593 = vmatprep.subr.mxu0 0.0
    %594 = vmatpush1.xpose.msra.mxu0 0.0
    %595 = vmatprep.subr.mxu0 0.0
    %596 = vmatpush1.xpose.msra.mxu0 0.0
    %597 = vmatprep.subr.mxu0 0.0
    %598 = vmatpush1.xpose.msra.mxu0 0.0
    %599 = vmatprep.subr.mxu0 0.0
    %600 = vmatpush1.xpose.msra.mxu0 0.0
    %601 = vmatprep.subr.mxu0 0.0
    %602 = vmatpush1.xpose.msra.mxu0 0.0
    %603 = vmatprep.subr.mxu0 0.0
    %604 = vmatpush1.xpose.msra.mxu0 0.0
    %605 = vmatprep.subr.mxu0 0.0
    %606 = vmatpush1.xpose.msra.mxu0 %v575
    %607 = vmatprep.subr.mxu0 0.0
    %608 = vmatpush1.xpose.msra.mxu0 %v573
    %609 = vmatprep.subr.mxu0 0.0
    %610 = vmatpush2.xpose.msra.mxu0 0.0
    %611 = vmatprep.subr.mxu0 0.0
    %612 = vmatpush2.xpose.msra.mxu0 0.0
    %613 = vmatprep.subr.mxu0 0.0
    %614 = vmatpush2.xpose.msra.mxu0 0.0
    %615 = vmatprep.subr.mxu0 0.0
    %616 = vmatpush2.xpose.msra.mxu0 0.0
    %617 = vmatprep.subr.mxu0 0.0
    %618 = vmatpush2.xpose.msra.mxu0 0.0
    %619 = vmatprep.subr.mxu0 0.0
    %620 = vmatpush2.xpose.msra.mxu0 0.0
    %621 = vmatprep.subr.mxu0 0.0
    %622 = vmatpush2.xpose.msra.mxu0 0.0
    %623 = vmatprep.subr.mxu0 0.0
    %624 = vmatpush2.xpose.msra.mxu0 0.0
    %625 = vmatprep.subr.mxu0 0.0
    %626 = vmatpush2.xpose.msra.mxu0 0.0
    %627 = vmatprep.subr.mxu0 0.0
    %628 = vmatpush2.xpose.msra.mxu0 0.0
    %629 = vmatprep.subr.mxu0 0.0
    %630 = vmatpush2.xpose.msra.mxu0 0.0
    %631 = vmatprep.subr.mxu0 0.0
    %632 = vmatpush2.xpose.msra.mxu0 0.0
    %633 = vmatprep.subr.mxu0 0.0
    %634 = vmatpush2.xpose.msra.mxu0 0.0
    %635 = vmatprep.subr.mxu0 0.0
    %636 = vmatpush2.xpose.msra.mxu0 0.0
    %637 = vmatprep.subr.mxu0 0.0
    %638 = vmatpush2.xpose.msra.mxu0 0.0
    %639 = vmatprep.subr.mxu0 0.0
    %640 = vmatpush2.xpose.msra.mxu0 0.0
    %641 = vmatprep.mubr.f32.mxu0 0.0
    %642 = vmatmul.mubr.f32.gmra.mxu0 %v569
    %v643 = vpop.f32.mrf.mxu0
    %v644 = vadd.f32 %v382, %v643
    %v645 = vpop.f32.mrf.mxu0
    %646 = vmatprep.mubr.f32.mxu0 0.0
    %647 = vmatmul.mubr.f32.gmra.mxu0 %v571
    %v648 = vpop.f32.mrf.mxu0
    %v649 = vadd.f32 %v383, %v648
    %v650 = vpop.f32.mrf.mxu0
    %651 = vdwg.mxu0
    %654 = vrot.lane.b32.xlu0 %v374, 120
    %v655 = vpop.permute.xlu0 %654
    %656 = vrot.lane.b32.xlu0 %v379, 120
    %v657 = vpop.permute.xlu0 %656
    %v658 = vsel %vm390, %v374, 0
    %v660 = vsel %vm390, %v379, 0
    %v662 = vsel %vm390, %v655, 0
    %v664 = vsel %vm390, %v657, 0
    %666 = vmatprep.subr.mxu0 0.0
    %667 = vmatpush1.xpose.msra.mxu0 0.0
    %668 = vmatprep.subr.mxu0 0.0
    %669 = vmatpush1.xpose.msra.mxu0 0.0
    %670 = vmatprep.subr.mxu0 0.0
    %671 = vmatpush1.xpose.msra.mxu0 0.0
    %672 = vmatprep.subr.mxu0 0.0
    %673 = vmatpush1.xpose.msra.mxu0 0.0
    %674 = vmatprep.subr.mxu0 0.0
    %675 = vmatpush1.xpose.msra.mxu0 0.0
    %676 = vmatprep.subr.mxu0 0.0
    %677 = vmatpush1.xpose.msra.mxu0 0.0
    %678 = vmatprep.subr.mxu0 0.0
    %679 = vmatpush1.xpose.msra.mxu0 0.0
    %680 = vmatprep.subr.mxu0 0.0
    %681 = vmatpush1.xpose.msra.mxu0 0.0
    %682 = vmatprep.subr.mxu0 0.0
    %683 = vmatpush1.xpose.msra.mxu0 0.0
    %684 = vmatprep.subr.mxu0 0.0
    %685 = vmatpush1.xpose.msra.mxu0 0.0
    %686 = vmatprep.subr.mxu0 0.0
    %687 = vmatpush1.xpose.msra.mxu0 0.0
    %688 = vmatprep.subr.mxu0 0.0
    %689 = vmatpush1.xpose.msra.mxu0 0.0
    %690 = vmatprep.subr.mxu0 0.0
    %691 = vmatpush1.xpose.msra.mxu0 0.0
    %692 = vmatprep.subr.mxu0 0.0
    %693 = vmatpush1.xpose.msra.mxu0 0.0
    %694 = vmatprep.subr.mxu0 0.0
    %695 = vmatpush1.xpose.msra.mxu0 %v664
    %696 = vmatprep.subr.mxu0 0.0
    %697 = vmatpush1.xpose.msra.mxu0 %v662
    %698 = vmatprep.subr.mxu0 0.0
    %699 = vmatpush2.xpose.msra.mxu0 0.0
    %700 = vmatprep.subr.mxu0 0.0
    %701 = vmatpush2.xpose.msra.mxu0 0.0
    %702 = vmatprep.subr.mxu0 0.0
    %703 = vmatpush2.xpose.msra.mxu0 0.0
    %704 = vmatprep.subr.mxu0 0.0
    %705 = vmatpush2.xpose.msra.mxu0 0.0
    %706 = vmatprep.subr.mxu0 0.0
    %707 = vmatpush2.xpose.msra.mxu0 0.0
    %708 = vmatprep.subr.mxu0 0.0
    %709 = vmatpush2.xpose.msra.mxu0 0.0
    %710 = vmatprep.subr.mxu0 0.0
    %711 = vmatpush2.xpose.msra.mxu0 0.0
    %712 = vmatprep.subr.mxu0 0.0
    %713 = vmatpush2.xpose.msra.mxu0 0.0
    %714 = vmatprep.subr.mxu0 0.0
    %715 = vmatpush2.xpose.msra.mxu0 0.0
    %716 = vmatprep.subr.mxu0 0.0
    %717 = vmatpush2.xpose.msra.mxu0 0.0
    %718 = vmatprep.subr.mxu0 0.0
    %719 = vmatpush2.xpose.msra.mxu0 0.0
    %720 = vmatprep.subr.mxu0 0.0
    %721 = vmatpush2.xpose.msra.mxu0 0.0
    %722 = vmatprep.subr.mxu0 0.0
    %723 = vmatpush2.xpose.msra.mxu0 0.0
    %724 = vmatprep.subr.mxu0 0.0
    %725 = vmatpush2.xpose.msra.mxu0 0.0
    %726 = vmatprep.subr.mxu0 0.0
    %727 = vmatpush2.xpose.msra.mxu0 0.0
    %728 = vmatprep.subr.mxu0 0.0
    %729 = vmatpush2.xpose.msra.mxu0 0.0
    %730 = vmatprep.mubr.f32.mxu0 0.0
    %731 = vmatmul.mubr.f32.gmra.mxu0 %v658
    %v732 = vpop.f32.mrf.mxu0
    %v733 = vadd.f32 %v382, %v732
    %v734 = vpop.f32.mrf.mxu0
    %735 = vmatprep.mubr.f32.mxu0 0.0
    %736 = vmatmul.mubr.f32.gmra.mxu0 %v660
    %v737 = vpop.f32.mrf.mxu0
    %v738 = vadd.f32 %v383, %v737
    %v739 = vpop.f32.mrf.mxu0
    %740 = vdwg.mxu0
    %vm741 = vcmask 130048
    %v742 = vsel %vm741, %v466, -inf
    %743 = vmax.xlane.f32.xlu0 %v742
    %v744 = vpop.xlane.xlu0 %743
    %v745 = vsel %vm741, %v471, -inf
    %746 = vmax.xlane.f32.xlu0 %v745
    %v747 = vpop.xlane.xlu0 %746
    %v748 = vsel %vm741, %v555, -inf
    %749 = vmax.xlane.f32.xlu0 %v748
    %v750 = vpop.xlane.xlu0 %749
    %v751 = vsel %vm741, %v560, -inf
    %752 = vmax.xlane.f32.xlu0 %v751
    %v753 = vpop.xlane.xlu0 %752
    %v754 = vsel %vm741, %v644, -inf
    %755 = vmax.xlane.f32.xlu0 %v754
    %v756 = vpop.xlane.xlu0 %755
    %v757 = vsel %vm741, %v649, -inf
    %758 = vmax.xlane.f32.xlu0 %v757
    %v759 = vpop.xlane.xlu0 %758
    %v760 = vsel %vm741, %v733, -inf
    %761 = vmax.xlane.f32.xlu0 %v760
    %v762 = vpop.xlane.xlu0 %761
    %v763 = vsel %vm741, %v738, -inf
    %764 = vmax.xlane.f32.xlu0 %v763
    %v765 = vpop.xlane.xlu0 %764
    %v766 = vsub.f32 %v466, %v744
    %v767 = vsub.f32 %v471, %v747
    %v768 = vsub.f32 %v555, %v750
    %v769 = vsub.f32 %v560, %v753
    %v770 = vsub.f32 %v644, %v756
    %v771 = vsub.f32 %v649, %v759
    %v772 = vsub.f32 %v733, %v762
    %v773 = vsub.f32 %v738, %v765
    %v774 = vmul.f32 %v766, 1.442695
    %v775 = vpow.pop %v774
    %v776 = vmul.f32 %v767, 1.442695
    %v777 = vpow.pop %v776
    %v778 = vmul.f32 %v768, 1.442695
    %v779 = vpow.pop %v778
    %v780 = vmul.f32 %v769, 1.442695
    %v781 = vpow.pop %v780
    %v782 = vmul.f32 %v770, 1.442695
    %v783 = vpow.pop %v782
    %v784 = vmul.f32 %v771, 1.442695
    %v785 = vpow.pop %v784
    %v786 = vmul.f32 %v772, 1.442695
    %v787 = vpow.pop %v786
    %v788 = vmul.f32 %v773, 1.442695
    %v789 = vpow.pop %v788
    %v790 = vsel %vm741, %v775, 0.0
    %791 = vadd.xlane.f32.xlu0 %v790
    %v792 = vpop.xlane.xlu0 %791
    %v793 = vsel %vm741, %v777, 0.0
    %794 = vadd.xlane.f32.xlu0 %v793
    %v795 = vpop.xlane.xlu0 %794
    %v796 = vsel %vm741, %v779, 0.0
    %797 = vadd.xlane.f32.xlu0 %v796
    %v798 = vpop.xlane.xlu0 %797
    %v799 = vsel %vm741, %v781, 0.0
    %800 = vadd.xlane.f32.xlu0 %v799
    %v801 = vpop.xlane.xlu0 %800
    %v802 = vsel %vm741, %v783, 0.0
    %803 = vadd.xlane.f32.xlu0 %v802
    %v804 = vpop.xlane.xlu0 %803
    %v805 = vsel %vm741, %v785, 0.0
    %806 = vadd.xlane.f32.xlu0 %v805
    %v807 = vpop.xlane.xlu0 %806
    %v808 = vsel %vm741, %v787, 0.0
    %809 = vadd.xlane.f32.xlu0 %v808
    %v810 = vpop.xlane.xlu0 %809
    %v811 = vsel %vm741, %v789, 0.0
    %812 = vadd.xlane.f32.xlu0 %v811
    %v813 = vpop.xlane.xlu0 %812
    %v814 = vrcp.pop %v792
    %v815 = vmul.f32 %v775, %v814
    %v816 = vrcp.pop %v795
    %v817 = vmul.f32 %v777, %v816
    %v818 = vrcp.pop %v798
    %v819 = vmul.f32 %v779, %v818
    %v820 = vrcp.pop %v801
    %v821 = vmul.f32 %v781, %v820
    %v822 = vrcp.pop %v804
    %v823 = vmul.f32 %v783, %v822
    %v824 = vrcp.pop %v807
    %v825 = vmul.f32 %v785, %v824
    %v826 = vrcp.pop %v810
    %v827 = vmul.f32 %v787, %v826
    %v828 = vrcp.pop %v813
    %v829 = vmul.f32 %v789, %v828
    %830 = vrot.lane.b32.xlu0 %v131, 112
    %v831 = vpop.permute.xlu0 %830
    %832 = vrot.lane.b32.xlu0 %v136, 112
    %v833 = vpop.permute.xlu0 %832
    %v837 = vsel %vm741, %v815, 0
    %v840 = vsel %vm741, %v817, 0
    %842 = vmatprep.subr.mxu0 0.0
    %843 = vmatpush1.msra.mxu0 0.0
    %844 = vmatprep.subr.mxu0 0.0
    %845 = vmatpush1.msra.mxu0 0.0
    %846 = vmatprep.subr.mxu0 0.0
    %847 = vmatpush1.msra.mxu0 0.0
    %848 = vmatprep.subr.mxu0 0.0
    %849 = vmatpush1.msra.mxu0 0.0
    %850 = vmatprep.subr.mxu0 0.0
    %851 = vmatpush1.msra.mxu0 0.0
    %852 = vmatprep.subr.mxu0 0.0
    %853 = vmatpush1.msra.mxu0 0.0
    %854 = vmatprep.subr.mxu0 0.0
    %855 = vmatpush1.msra.mxu0 0.0
    %856 = vmatprep.subr.mxu0 0.0
    %857 = vmatpush1.msra.mxu0 0.0
    %858 = vmatprep.subr.mxu0 0.0
    %859 = vmatpush1.msra.mxu0 0.0
    %860 = vmatprep.subr.mxu0 0.0
    %861 = vmatpush1.msra.mxu0 0.0
    %862 = vmatprep.subr.mxu0 0.0
    %863 = vmatpush1.msra.mxu0 0.0
    %864 = vmatprep.subr.mxu0 0.0
    %865 = vmatpush1.msra.mxu0 0.0
    %866 = vmatprep.subr.mxu0 0.0
    %867 = vmatpush1.msra.mxu0 0.0
    %868 = vmatprep.subr.mxu0 0.0
    %869 = vmatpush1.msra.mxu0 0.0
    %870 = vmatprep.subr.mxu0 0.0
    %871 = vmatpush1.msra.mxu0 %v833
    %872 = vmatprep.subr.mxu0 0.0
    %873 = vmatpush1.msra.mxu0 %v831
    %874 = vmatprep.subr.mxu0 0.0
    %875 = vmatpush2.msra.mxu0 0.0
    %876 = vmatprep.subr.mxu0 0.0
    %877 = vmatpush2.msra.mxu0 0.0
    %878 = vmatprep.subr.mxu0 0.0
    %879 = vmatpush2.msra.mxu0 0.0
    %880 = vmatprep.subr.mxu0 0.0
    %881 = vmatpush2.msra.mxu0 0.0
    %882 = vmatprep.subr.mxu0 0.0
    %883 = vmatpush2.msra.mxu0 0.0
    %884 = vmatprep.subr.mxu0 0.0
    %885 = vmatpush2.msra.mxu0 0.0
    %886 = vmatprep.subr.mxu0 0.0
    %887 = vmatpush2.msra.mxu0 0.0
    %888 = vmatprep.subr.mxu0 0.0
    %889 = vmatpush2.msra.mxu0 0.0
    %890 = vmatprep.subr.mxu0 0.0
    %891 = vmatpush2.msra.mxu0 0.0
    %892 = vmatprep.subr.mxu0 0.0
    %893 = vmatpush2.msra.mxu0 0.0
    %894 = vmatprep.subr.mxu0 0.0
    %895 = vmatpush2.msra.mxu0 0.0
    %896 = vmatprep.subr.mxu0 0.0
    %897 = vmatpush2.msra.mxu0 0.0
    %898 = vmatprep.subr.mxu0 0.0
    %899 = vmatpush2.msra.mxu0 0.0
    %900 = vmatprep.subr.mxu0 0.0
    %901 = vmatpush2.msra.mxu0 0.0
    %902 = vmatprep.subr.mxu0 0.0
    %903 = vmatpush2.msra.mxu0 0.0
    %904 = vmatprep.subr.mxu0 0.0
    %905 = vmatpush2.msra.mxu0 0.0
    %906 = vmatprep.mubr.f32.mxu0 0.0
    %907 = vmatmul.mubr.f32.gmra.mxu0 %v837
    %v908 = vpop.f32.mrf.mxu0
    %v909 = vadd.f32 0.0, %v908
    %v910 = vpop.f32.mrf.mxu0
    %911 = vmatprep.mubr.f32.mxu0 0.0
    %912 = vmatmul.mubr.f32.gmra.mxu0 %v840
    %v913 = vpop.f32.mrf.mxu0
    %v914 = vadd.f32 0.0, %v913
    %v915 = vpop.f32.mrf.mxu0
    %916 = vdwg.mxu0
    %917 = vrot.lane.b32.xlu0 %v212, 112
    %v918 = vpop.permute.xlu0 %917
    %919 = vrot.lane.b32.xlu0 %v217, 112
    %v920 = vpop.permute.xlu0 %919
    %v924 = vsel %vm741, %v819, 0
    %v927 = vsel %vm741, %v821, 0
    %929 = vmatprep.subr.mxu0 0.0
    %930 = vmatpush1.msra.mxu0 0.0
    %931 = vmatprep.subr.mxu0 0.0
    %932 = vmatpush1.msra.mxu0 0.0
    %933 = vmatprep.subr.mxu0 0.0
    %934 = vmatpush1.msra.mxu0 0.0
    %935 = vmatprep.subr.mxu0 0.0
    %936 = vmatpush1.msra.mxu0 0.0
    %937 = vmatprep.subr.mxu0 0.0
    %938 = vmatpush1.msra.mxu0 0.0
    %939 = vmatprep.subr.mxu0 0.0
    %940 = vmatpush1.msra.mxu0 0.0
    %941 = vmatprep.subr.mxu0 0.0
    %942 = vmatpush1.msra.mxu0 0.0
    %943 = vmatprep.subr.mxu0 0.0
    %944 = vmatpush1.msra.mxu0 0.0
    %945 = vmatprep.subr.mxu0 0.0
    %946 = vmatpush1.msra.mxu0 0.0
    %947 = vmatprep.subr.mxu0 0.0
    %948 = vmatpush1.msra.mxu0 0.0
    %949 = vmatprep.subr.mxu0 0.0
    %950 = vmatpush1.msra.mxu0 0.0
    %951 = vmatprep.subr.mxu0 0.0
    %952 = vmatpush1.msra.mxu0 0.0
    %953 = vmatprep.subr.mxu0 0.0
    %954 = vmatpush1.msra.mxu0 0.0
    %955 = vmatprep.subr.mxu0 0.0
    %956 = vmatpush1.msra.mxu0 0.0
    %957 = vmatprep.subr.mxu0 0.0
    %958 = vmatpush1.msra.mxu0 %v920
    %959 = vmatprep.subr.mxu0 0.0
    %960 = vmatpush1.msra.mxu0 %v918
    %961 = vmatprep.subr.mxu0 0.0
    %962 = vmatpush2.msra.mxu0 0.0
    %963 = vmatprep.subr.mxu0 0.0
    %964 = vmatpush2.msra.mxu0 0.0
    %965 = vmatprep.subr.mxu0 0.0
    %966 = vmatpush2.msra.mxu0 0.0
    %967 = vmatprep.subr.mxu0 0.0
    %968 = vmatpush2.msra.mxu0 0.0
    %969 = vmatprep.subr.mxu0 0.0
    %970 = vmatpush2.msra.mxu0 0.0
    %971 = vmatprep.subr.mxu0 0.0
    %972 = vmatpush2.msra.mxu0 0.0
    %973 = vmatprep.subr.mxu0 0.0
    %974 = vmatpush2.msra.mxu0 0.0
    %975 = vmatprep.subr.mxu0 0.0
    %976 = vmatpush2.msra.mxu0 0.0
    %977 = vmatprep.subr.mxu0 0.0
    %978 = vmatpush2.msra.mxu0 0.0
    %979 = vmatprep.subr.mxu0 0.0
    %980 = vmatpush2.msra.mxu0 0.0
    %981 = vmatprep.subr.mxu0 0.0
    %982 = vmatpush2.msra.mxu0 0.0
    %983 = vmatprep.subr.mxu0 0.0
    %984 = vmatpush2.msra.mxu0 0.0
    %985 = vmatprep.subr.mxu0 0.0
    %986 = vmatpush2.msra.mxu0 0.0
    %987 = vmatprep.subr.mxu0 0.0
    %988 = vmatpush2.msra.mxu0 0.0
    %989 = vmatprep.subr.mxu0 0.0
    %990 = vmatpush2.msra.mxu0 0.0
    %991 = vmatprep.subr.mxu0 0.0
    %992 = vmatpush2.msra.mxu0 0.0
    %993 = vmatprep.mubr.f32.mxu0 0.0
    %994 = vmatmul.mubr.f32.gmra.mxu0 %v924
    %v995 = vpop.f32.mrf.mxu0
    %v996 = vadd.f32 0.0, %v995
    %v997 = vpop.f32.mrf.mxu0
    %998 = vmatprep.mubr.f32.mxu0 0.0
    %999 = vmatmul.mubr.f32.gmra.mxu0 %v927
    %v1000 = vpop.f32.mrf.mxu0
    %v1001 = vadd.f32 0.0, %v1000
    %v1002 = vpop.f32.mrf.mxu0
    %1003 = vdwg.mxu0
    %1004 = vrot.lane.b32.xlu0 %v293, 112
    %v1005 = vpop.permute.xlu0 %1004
    %1006 = vrot.lane.b32.xlu0 %v298, 112
    %v1007 = vpop.permute.xlu0 %1006
    %v1011 = vsel %vm741, %v823, 0
    %v1014 = vsel %vm741, %v825, 0
    %1016 = vmatprep.subr.mxu0 0.0
    %1017 = vmatpush1.msra.mxu0 0.0
    %1018 = vmatprep.subr.mxu0 0.0
    %1019 = vmatpush1.msra.mxu0 0.0
    %1020 = vmatprep.subr.mxu0 0.0
    %1021 = vmatpush1.msra.mxu0 0.0
    %1022 = vmatprep.subr.mxu0 0.0
    %1023 = vmatpush1.msra.mxu0 0.0
    %1024 = vmatprep.subr.mxu0 0.0
    %1025 = vmatpush1.msra.mxu0 0.0
    %1026 = vmatprep.subr.mxu0 0.0
    %1027 = vmatpush1.msra.mxu0 0.0
    %1028 = vmatprep.subr.mxu0 0.0
    %1029 = vmatpush1.msra.mxu0 0.0
    %1030 = vmatprep.subr.mxu0 0.0
    %1031 = vmatpush1.msra.mxu0 0.0
    %1032 = vmatprep.subr.mxu0 0.0
    %1033 = vmatpush1.msra.mxu0 0.0
    %1034 = vmatprep.subr.mxu0 0.0
    %1035 = vmatpush1.msra.mxu0 0.0
    %1036 = vmatprep.subr.mxu0 0.0
    %1037 = vmatpush1.msra.mxu0 0.0
    %1038 = vmatprep.subr.mxu0 0.0
    %1039 = vmatpush1.msra.mxu0 0.0
    %1040 = vmatprep.subr.mxu0 0.0
    %1041 = vmatpush1.msra.mxu0 0.0
    %1042 = vmatprep.subr.mxu0 0.0
    %1043 = vmatpush1.msra.mxu0 0.0
    %1044 = vmatprep.subr.mxu0 0.0
    %1045 = vmatpush1.msra.mxu0 %v1007
    %1046 = vmatprep.subr.mxu0 0.0
    %1047 = vmatpush1.msra.mxu0 %v1005
    %1048 = vmatprep.subr.mxu0 0.0
    %1049 = vmatpush2.msra.mxu0 0.0
    %1050 = vmatprep.subr.mxu0 0.0
    %1051 = vmatpush2.msra.mxu0 0.0
    %1052 = vmatprep.subr.mxu0 0.0
    %1053 = vmatpush2.msra.mxu0 0.0
    %1054 = vmatprep.subr.mxu0 0.0
    %1055 = vmatpush2.msra.mxu0 0.0
    %1056 = vmatprep.subr.mxu0 0.0
    %1057 = vmatpush2.msra.mxu0 0.0
    %1058 = vmatprep.subr.mxu0 0.0
    %1059 = vmatpush2.msra.mxu0 0.0
    %1060 = vmatprep.subr.mxu0 0.0
    %1061 = vmatpush2.msra.mxu0 0.0
    %1062 = vmatprep.subr.mxu0 0.0
    %1063 = vmatpush2.msra.mxu0 0.0
    %1064 = vmatprep.subr.mxu0 0.0
    %1065 = vmatpush2.msra.mxu0 0.0
    %1066 = vmatprep.subr.mxu0 0.0
    %1067 = vmatpush2.msra.mxu0 0.0
    %1068 = vmatprep.subr.mxu0 0.0
    %1069 = vmatpush2.msra.mxu0 0.0
    %1070 = vmatprep.subr.mxu0 0.0
    %1071 = vmatpush2.msra.mxu0 0.0
    %1072 = vmatprep.subr.mxu0 0.0
    %1073 = vmatpush2.msra.mxu0 0.0
    %1074 = vmatprep.subr.mxu0 0.0
    %1075 = vmatpush2.msra.mxu0 0.0
    %1076 = vmatprep.subr.mxu0 0.0
    %1077 = vmatpush2.msra.mxu0 0.0
    %1078 = vmatprep.subr.mxu0 0.0
    %1079 = vmatpush2.msra.mxu0 0.0
    %1080 = vmatprep.mubr.f32.mxu0 0.0
    %1081 = vmatmul.mubr.f32.gmra.mxu0 %v1011
    %v1082 = vpop.f32.mrf.mxu0
    %v1083 = vadd.f32 0.0, %v1082
    %v1084 = vpop.f32.mrf.mxu0
    %1085 = vmatprep.mubr.f32.mxu0 0.0
    %1086 = vmatmul.mubr.f32.gmra.mxu0 %v1014
    %v1087 = vpop.f32.mrf.mxu0
    %v1088 = vadd.f32 0.0, %v1087
    %v1089 = vpop.f32.mrf.mxu0
    %1090 = vdwg.mxu0
    %1091 = vrot.lane.b32.xlu0 %v374, 112
    %v1092 = vpop.permute.xlu0 %1091
    %1093 = vrot.lane.b32.xlu0 %v379, 112
    %v1094 = vpop.permute.xlu0 %1093
    %v1098 = vsel %vm741, %v827, 0
    %v1101 = vsel %vm741, %v829, 0
    %1103 = vmatprep.subr.mxu0 0.0
    %1104 = vmatpush1.msra.mxu0 0.0
    %1105 = vmatprep.subr.mxu0 0.0
    %1106 = vmatpush1.msra.mxu0 0.0
    %1107 = vmatprep.subr.mxu0 0.0
    %1108 = vmatpush1.msra.mxu0 0.0
    %1109 = vmatprep.subr.mxu0 0.0
    %1110 = vmatpush1.msra.mxu0 0.0
    %1111 = vmatprep.subr.mxu0 0.0
    %1112 = vmatpush1.msra.mxu0 0.0
    %1113 = vmatprep.subr.mxu0 0.0
    %1114 = vmatpush1.msra.mxu0 0.0
    %1115 = vmatprep.subr.mxu0 0.0
    %1116 = vmatpush1.msra.mxu0 0.0
    %1117 = vmatprep.subr.mxu0 0.0
    %1118 = vmatpush1.msra.mxu0 0.0
    %1119 = vmatprep.subr.mxu0 0.0
    %1120 = vmatpush1.msra.mxu0 0.0
    %1121 = vmatprep.subr.mxu0 0.0
    %1122 = vmatpush1.msra.mxu0 0.0
    %1123 = vmatprep.subr.mxu0 0.0
    %1124 = vmatpush1.msra.mxu0 0.0
    %1125 = vmatprep.subr.mxu0 0.0
    %1126 = vmatpush1.msra.mxu0 0.0
    %1127 = vmatprep.subr.mxu0 0.0
    %1128 = vmatpush1.msra.mxu0 0.0
    %1129 = vmatprep.subr.mxu0 0.0
    %1130 = vmatpush1.msra.mxu0 0.0
    %1131 = vmatprep.subr.mxu0 0.0
    %1132 = vmatpush1.msra.mxu0 %v1094
    %1133 = vmatprep.subr.mxu0 0.0
    %1134 = vmatpush1.msra.mxu0 %v1092
    %1135 = vmatprep.subr.mxu0 0.0
    %1136 = vmatpush2.msra.mxu0 0.0
    %1137 = vmatprep.subr.mxu0 0.0
    %1138 = vmatpush2.msra.mxu0 0.0
    %1139 = vmatprep.subr.mxu0 0.0
    %1140 = vmatpush2.msra.mxu0 0.0
    %1141 = vmatprep.subr.mxu0 0.0
    %1142 = vmatpush2.msra.mxu0 0.0
    %1143 = vmatprep.subr.mxu0 0.0
    %1144 = vmatpush2.msra.mxu0 0.0
    %1145 = vmatprep.subr.mxu0 0.0
    %1146 = vmatpush2.msra.mxu0 0.0
    %1147 = vmatprep.subr.mxu0 0.0
    %1148 = vmatpush2.msra.mxu0 0.0
    %1149 = vmatprep.subr.mxu0 0.0
    %1150 = vmatpush2.msra.mxu0 0.0
    %1151 = vmatprep.subr.mxu0 0.0
    %1152 = vmatpush2.msra.mxu0 0.0
    %1153 = vmatprep.subr.mxu0 0.0
    %1154 = vmatpush2.msra.mxu0 0.0
    %1155 = vmatprep.subr.mxu0 0.0
    %1156 = vmatpush2.msra.mxu0 0.0
    %1157 = vmatprep.subr.mxu0 0.0
    %1158 = vmatpush2.msra.mxu0 0.0
    %1159 = vmatprep.subr.mxu0 0.0
    %1160 = vmatpush2.msra.mxu0 0.0
    %1161 = vmatprep.subr.mxu0 0.0
    %1162 = vmatpush2.msra.mxu0 0.0
    %1163 = vmatprep.subr.mxu0 0.0
    %1164 = vmatpush2.msra.mxu0 0.0
    %1165 = vmatprep.subr.mxu0 0.0
    %1166 = vmatpush2.msra.mxu0 0.0
    %1167 = vmatprep.mubr.f32.mxu0 0.0
    %1168 = vmatmul.mubr.f32.gmra.mxu0 %v1098
    %v1169 = vpop.f32.mrf.mxu0
    %v1170 = vadd.f32 0.0, %v1169
    %v1171 = vpop.f32.mrf.mxu0
    %1172 = vmatprep.mubr.f32.mxu0 0.0
    %1173 = vmatmul.mubr.f32.gmra.mxu0 %v1101
    %v1174 = vpop.f32.mrf.mxu0
    %v1175 = vadd.f32 0.0, %v1174
    %v1176 = vpop.f32.mrf.mxu0
    %1177 = vdwg.mxu0
    %v1178 = vld [vmem:[%s3] sm:$0xff]
    %v1179 = vld [vmem:[%s3 + $0x8] sm:$0xff]
    %v1180 = vld [vmem:[%s3 + $0x10] sm:$0xff]
    %v1181 = vld [vmem:[%s3 + $0x18] sm:$0xff]
    %v1183 = vsel %vm390, %v909, 0
    %v1186 = vsel %vm390, %v914, 0
    %1188 = vmatprep.subr.mxu0 0.0
    %1189 = vmatpush1.msra.mxu0 0.0
    %1190 = vmatprep.subr.mxu0 0.0
    %1191 = vmatpush1.msra.mxu0 0.0
    %1192 = vmatprep.subr.mxu0 0.0
    %1193 = vmatpush1.msra.mxu0 0.0
    %1194 = vmatprep.subr.mxu0 0.0
    %1195 = vmatpush1.msra.mxu0 0.0
    %1196 = vmatprep.subr.mxu0 0.0
    %1197 = vmatpush1.msra.mxu0 0.0
    %1198 = vmatprep.subr.mxu0 0.0
    %1199 = vmatpush1.msra.mxu0 0.0
    %1200 = vmatprep.subr.mxu0 0.0
    %1201 = vmatpush1.msra.mxu0 0.0
    %1202 = vmatprep.subr.mxu0 0.0
    %1203 = vmatpush1.msra.mxu0 0.0
    %1204 = vmatprep.subr.mxu0 0.0
    %1205 = vmatpush1.msra.mxu0 0.0
    %1206 = vmatprep.subr.mxu0 0.0
    %1207 = vmatpush1.msra.mxu0 0.0
    %1208 = vmatprep.subr.mxu0 0.0
    %1209 = vmatpush1.msra.mxu0 0.0
    %1210 = vmatprep.subr.mxu0 0.0
    %1211 = vmatpush1.msra.mxu0 0.0
    %1212 = vmatprep.subr.mxu0 0.0
    %1213 = vmatpush1.msra.mxu0 0.0
    %1214 = vmatprep.subr.mxu0 0.0
    %1215 = vmatpush1.msra.mxu0 0.0
    %1216 = vmatprep.subr.mxu0 0.0
    %1217 = vmatpush1.msra.mxu0 0.0
    %1218 = vmatprep.subr.mxu0 0.0
    %1219 = vmatpush1.msra.mxu0 %v1178
    %1220 = vmatprep.subr.mxu0 0.0
    %1221 = vmatpush2.msra.mxu0 0.0
    %1222 = vmatprep.subr.mxu0 0.0
    %1223 = vmatpush2.msra.mxu0 0.0
    %1224 = vmatprep.subr.mxu0 0.0
    %1225 = vmatpush2.msra.mxu0 0.0
    %1226 = vmatprep.subr.mxu0 0.0
    %1227 = vmatpush2.msra.mxu0 0.0
    %1228 = vmatprep.subr.mxu0 0.0
    %1229 = vmatpush2.msra.mxu0 0.0
    %1230 = vmatprep.subr.mxu0 0.0
    %1231 = vmatpush2.msra.mxu0 0.0
    %1232 = vmatprep.subr.mxu0 0.0
    %1233 = vmatpush2.msra.mxu0 0.0
    %1234 = vmatprep.subr.mxu0 0.0
    %1235 = vmatpush2.msra.mxu0 0.0
    %1236 = vmatprep.subr.mxu0 0.0
    %1237 = vmatpush2.msra.mxu0 0.0
    %1238 = vmatprep.subr.mxu0 0.0
    %1239 = vmatpush2.msra.mxu0 0.0
    %1240 = vmatprep.subr.mxu0 0.0
    %1241 = vmatpush2.msra.mxu0 0.0
    %1242 = vmatprep.subr.mxu0 0.0
    %1243 = vmatpush2.msra.mxu0 0.0
    %1244 = vmatprep.subr.mxu0 0.0
    %1245 = vmatpush2.msra.mxu0 0.0
    %1246 = vmatprep.subr.mxu0 0.0
    %1247 = vmatpush2.msra.mxu0 0.0
    %1248 = vmatprep.subr.mxu0 0.0
    %1249 = vmatpush2.msra.mxu0 0.0
    %1250 = vmatprep.subr.mxu0 0.0
    %1251 = vmatpush2.msra.mxu0 0.0
    %1252 = vmatprep.mubr.f32.mxu0 0.0
    %1253 = vmatmul.mubr.f32.gmra.mxu0 %v1183
    %v1254 = vpop.f32.mrf.mxu0
    %v1255 = vadd.f32 0.0, %v1254
    %v1256 = vpop.f32.mrf.mxu0
    %1257 = vmatprep.mubr.f32.mxu0 0.0
    %1258 = vmatmul.mubr.f32.gmra.mxu0 %v1186
    %v1259 = vpop.f32.mrf.mxu0
    %v1260 = vadd.f32 0.0, %v1259
    %v1261 = vpop.f32.mrf.mxu0
    %1262 = vdwg.mxu0
    %v1264 = vsel %vm390, %v996, 0
    %v1267 = vsel %vm390, %v1001, 0
    %1269 = vmatprep.subr.mxu0 0.0
    %1270 = vmatpush1.msra.mxu0 0.0
    %1271 = vmatprep.subr.mxu0 0.0
    %1272 = vmatpush1.msra.mxu0 0.0
    %1273 = vmatprep.subr.mxu0 0.0
    %1274 = vmatpush1.msra.mxu0 0.0
    %1275 = vmatprep.subr.mxu0 0.0
    %1276 = vmatpush1.msra.mxu0 0.0
    %1277 = vmatprep.subr.mxu0 0.0
    %1278 = vmatpush1.msra.mxu0 0.0
    %1279 = vmatprep.subr.mxu0 0.0
    %1280 = vmatpush1.msra.mxu0 0.0
    %1281 = vmatprep.subr.mxu0 0.0
    %1282 = vmatpush1.msra.mxu0 0.0
    %1283 = vmatprep.subr.mxu0 0.0
    %1284 = vmatpush1.msra.mxu0 0.0
    %1285 = vmatprep.subr.mxu0 0.0
    %1286 = vmatpush1.msra.mxu0 0.0
    %1287 = vmatprep.subr.mxu0 0.0
    %1288 = vmatpush1.msra.mxu0 0.0
    %1289 = vmatprep.subr.mxu0 0.0
    %1290 = vmatpush1.msra.mxu0 0.0
    %1291 = vmatprep.subr.mxu0 0.0
    %1292 = vmatpush1.msra.mxu0 0.0
    %1293 = vmatprep.subr.mxu0 0.0
    %1294 = vmatpush1.msra.mxu0 0.0
    %1295 = vmatprep.subr.mxu0 0.0
    %1296 = vmatpush1.msra.mxu0 0.0
    %1297 = vmatprep.subr.mxu0 0.0
    %1298 = vmatpush1.msra.mxu0 0.0
    %1299 = vmatprep.subr.mxu0 0.0
    %1300 = vmatpush1.msra.mxu0 %v1179
    %1301 = vmatprep.subr.mxu0 0.0
    %1302 = vmatpush2.msra.mxu0 0.0
    %1303 = vmatprep.subr.mxu0 0.0
    %1304 = vmatpush2.msra.mxu0 0.0
    %1305 = vmatprep.subr.mxu0 0.0
    %1306 = vmatpush2.msra.mxu0 0.0
    %1307 = vmatprep.subr.mxu0 0.0
    %1308 = vmatpush2.msra.mxu0 0.0
    %1309 = vmatprep.subr.mxu0 0.0
    %1310 = vmatpush2.msra.mxu0 0.0
    %1311 = vmatprep.subr.mxu0 0.0
    %1312 = vmatpush2.msra.mxu0 0.0
    %1313 = vmatprep.subr.mxu0 0.0
    %1314 = vmatpush2.msra.mxu0 0.0
    %1315 = vmatprep.subr.mxu0 0.0
    %1316 = vmatpush2.msra.mxu0 0.0
    %1317 = vmatprep.subr.mxu0 0.0
    %1318 = vmatpush2.msra.mxu0 0.0
    %1319 = vmatprep.subr.mxu0 0.0
    %1320 = vmatpush2.msra.mxu0 0.0
    %1321 = vmatprep.subr.mxu0 0.0
    %1322 = vmatpush2.msra.mxu0 0.0
    %1323 = vmatprep.subr.mxu0 0.0
    %1324 = vmatpush2.msra.mxu0 0.0
    %1325 = vmatprep.subr.mxu0 0.0
    %1326 = vmatpush2.msra.mxu0 0.0
    %1327 = vmatprep.subr.mxu0 0.0
    %1328 = vmatpush2.msra.mxu0 0.0
    %1329 = vmatprep.subr.mxu0 0.0
    %1330 = vmatpush2.msra.mxu0 0.0
    %1331 = vmatprep.subr.mxu0 0.0
    %1332 = vmatpush2.msra.mxu0 0.0
    %1333 = vmatprep.mubr.f32.mxu0 0.0
    %1334 = vmatmul.mubr.f32.gmra.mxu0 %v1264
    %v1335 = vpop.f32.mrf.mxu0
    %v1336 = vadd.f32 0.0, %v1335
    %v1337 = vpop.f32.mrf.mxu0
    %1338 = vmatprep.mubr.f32.mxu0 0.0
    %1339 = vmatmul.mubr.f32.gmra.mxu0 %v1267
    %v1340 = vpop.f32.mrf.mxu0
    %v1341 = vadd.f32 0.0, %v1340
    %v1342 = vpop.f32.mrf.mxu0
    %1343 = vdwg.mxu0
    %v1345 = vsel %vm390, %v1083, 0
    %v1348 = vsel %vm390, %v1088, 0
    %1350 = vmatprep.subr.mxu0 0.0
    %1351 = vmatpush1.msra.mxu0 0.0
    %1352 = vmatprep.subr.mxu0 0.0
    %1353 = vmatpush1.msra.mxu0 0.0
    %1354 = vmatprep.subr.mxu0 0.0
    %1355 = vmatpush1.msra.mxu0 0.0
    %1356 = vmatprep.subr.mxu0 0.0
    %1357 = vmatpush1.msra.mxu0 0.0
    %1358 = vmatprep.subr.mxu0 0.0
    %1359 = vmatpush1.msra.mxu0 0.0
    %1360 = vmatprep.subr.mxu0 0.0
    %1361 = vmatpush1.msra.mxu0 0.0
    %1362 = vmatprep.subr.mxu0 0.0
    %1363 = vmatpush1.msra.mxu0 0.0
    %1364 = vmatprep.subr.mxu0 0.0
    %1365 = vmatpush1.msra.mxu0 0.0
    %1366 = vmatprep.subr.mxu0 0.0
    %1367 = vmatpush1.msra.mxu0 0.0
    %1368 = vmatprep.subr.mxu0 0.0
    %1369 = vmatpush1.msra.mxu0 0.0
    %1370 = vmatprep.subr.mxu0 0.0
    %1371 = vmatpush1.msra.mxu0 0.0
    %1372 = vmatprep.subr.mxu0 0.0
    %1373 = vmatpush1.msra.mxu0 0.0
    %1374 = vmatprep.subr.mxu0 0.0
    %1375 = vmatpush1.msra.mxu0 0.0
    %1376 = vmatprep.subr.mxu0 0.0
    %1377 = vmatpush1.msra.mxu0 0.0
    %1378 = vmatprep.subr.mxu0 0.0
    %1379 = vmatpush1.msra.mxu0 0.0
    %1380 = vmatprep.subr.mxu0 0.0
    %1381 = vmatpush1.msra.mxu0 %v1180
    %1382 = vmatprep.subr.mxu0 0.0
    %1383 = vmatpush2.msra.mxu0 0.0
    %1384 = vmatprep.subr.mxu0 0.0
    %1385 = vmatpush2.msra.mxu0 0.0
    %1386 = vmatprep.subr.mxu0 0.0
    %1387 = vmatpush2.msra.mxu0 0.0
    %1388 = vmatprep.subr.mxu0 0.0
    %1389 = vmatpush2.msra.mxu0 0.0
    %1390 = vmatprep.subr.mxu0 0.0
    %1391 = vmatpush2.msra.mxu0 0.0
    %1392 = vmatprep.subr.mxu0 0.0
    %1393 = vmatpush2.msra.mxu0 0.0
    %1394 = vmatprep.subr.mxu0 0.0
    %1395 = vmatpush2.msra.mxu0 0.0
    %1396 = vmatprep.subr.mxu0 0.0
    %1397 = vmatpush2.msra.mxu0 0.0
    %1398 = vmatprep.subr.mxu0 0.0
    %1399 = vmatpush2.msra.mxu0 0.0
    %1400 = vmatprep.subr.mxu0 0.0
    %1401 = vmatpush2.msra.mxu0 0.0
    %1402 = vmatprep.subr.mxu0 0.0
    %1403 = vmatpush2.msra.mxu0 0.0
    %1404 = vmatprep.subr.mxu0 0.0
    %1405 = vmatpush2.msra.mxu0 0.0
    %1406 = vmatprep.subr.mxu0 0.0
    %1407 = vmatpush2.msra.mxu0 0.0
    %1408 = vmatprep.subr.mxu0 0.0
    %1409 = vmatpush2.msra.mxu0 0.0
    %1410 = vmatprep.subr.mxu0 0.0
    %1411 = vmatpush2.msra.mxu0 0.0
    %1412 = vmatprep.subr.mxu0 0.0
    %1413 = vmatpush2.msra.mxu0 0.0
    %1414 = vmatprep.mubr.f32.mxu0 0.0
    %1415 = vmatmul.mubr.f32.gmra.mxu0 %v1345
    %v1416 = vpop.f32.mrf.mxu0
    %v1417 = vadd.f32 0.0, %v1416
    %v1418 = vpop.f32.mrf.mxu0
    %1419 = vmatprep.mubr.f32.mxu0 0.0
    %1420 = vmatmul.mubr.f32.gmra.mxu0 %v1348
    %v1421 = vpop.f32.mrf.mxu0
    %v1422 = vadd.f32 0.0, %v1421
    %v1423 = vpop.f32.mrf.mxu0
    %1424 = vdwg.mxu0
    %v1426 = vsel %vm390, %v1170, 0
    %v1429 = vsel %vm390, %v1175, 0
    %1431 = vmatprep.subr.mxu0 0.0
    %1432 = vmatpush1.msra.mxu0 0.0
    %1433 = vmatprep.subr.mxu0 0.0
    %1434 = vmatpush1.msra.mxu0 0.0
    %1435 = vmatprep.subr.mxu0 0.0
    %1436 = vmatpush1.msra.mxu0 0.0
    %1437 = vmatprep.subr.mxu0 0.0
    %1438 = vmatpush1.msra.mxu0 0.0
    %1439 = vmatprep.subr.mxu0 0.0
    %1440 = vmatpush1.msra.mxu0 0.0
    %1441 = vmatprep.subr.mxu0 0.0
    %1442 = vmatpush1.msra.mxu0 0.0
    %1443 = vmatprep.subr.mxu0 0.0
    %1444 = vmatpush1.msra.mxu0 0.0
    %1445 = vmatprep.subr.mxu0 0.0
    %1446 = vmatpush1.msra.mxu0 0.0
    %1447 = vmatprep.subr.mxu0 0.0
    %1448 = vmatpush1.msra.mxu0 0.0
    %1449 = vmatprep.subr.mxu0 0.0
    %1450 = vmatpush1.msra.mxu0 0.0
    %1451 = vmatprep.subr.mxu0 0.0
    %1452 = vmatpush1.msra.mxu0 0.0
    %1453 = vmatprep.subr.mxu0 0.0
    %1454 = vmatpush1.msra.mxu0 0.0
    %1455 = vmatprep.subr.mxu0 0.0
    %1456 = vmatpush1.msra.mxu0 0.0
    %1457 = vmatprep.subr.mxu0 0.0
    %1458 = vmatpush1.msra.mxu0 0.0
    %1459 = vmatprep.subr.mxu0 0.0
    %1460 = vmatpush1.msra.mxu0 0.0
    %1461 = vmatprep.subr.mxu0 0.0
    %1462 = vmatpush1.msra.mxu0 %v1181
    %1463 = vmatprep.subr.mxu0 0.0
    %1464 = vmatpush2.msra.mxu0 0.0
    %1465 = vmatprep.subr.mxu0 0.0
    %1466 = vmatpush2.msra.mxu0 0.0
    %1467 = vmatprep.subr.mxu0 0.0
    %1468 = vmatpush2.msra.mxu0 0.0
    %1469 = vmatprep.subr.mxu0 0.0
    %1470 = vmatpush2.msra.mxu0 0.0
    %1471 = vmatprep.subr.mxu0 0.0
    %1472 = vmatpush2.msra.mxu0 0.0
    %1473 = vmatprep.subr.mxu0 0.0
    %1474 = vmatpush2.msra.mxu0 0.0
    %1475 = vmatprep.subr.mxu0 0.0
    %1476 = vmatpush2.msra.mxu0 0.0
    %1477 = vmatprep.subr.mxu0 0.0
    %1478 = vmatpush2.msra.mxu0 0.0
    %1479 = vmatprep.subr.mxu0 0.0
    %1480 = vmatpush2.msra.mxu0 0.0
    %1481 = vmatprep.subr.mxu0 0.0
    %1482 = vmatpush2.msra.mxu0 0.0
    %1483 = vmatprep.subr.mxu0 0.0
    %1484 = vmatpush2.msra.mxu0 0.0
    %1485 = vmatprep.subr.mxu0 0.0
    %1486 = vmatpush2.msra.mxu0 0.0
    %1487 = vmatprep.subr.mxu0 0.0
    %1488 = vmatpush2.msra.mxu0 0.0
    %1489 = vmatprep.subr.mxu0 0.0
    %1490 = vmatpush2.msra.mxu0 0.0
    %1491 = vmatprep.subr.mxu0 0.0
    %1492 = vmatpush2.msra.mxu0 0.0
    %1493 = vmatprep.subr.mxu0 0.0
    %1494 = vmatpush2.msra.mxu0 0.0
    %1495 = vmatprep.mubr.f32.mxu0 0.0
    %1496 = vmatmul.mubr.f32.gmra.mxu0 %v1426
    %v1497 = vpop.f32.mrf.mxu0
    %v1498 = vadd.f32 0.0, %v1497
    %v1499 = vpop.f32.mrf.mxu0
    %1500 = vmatprep.mubr.f32.mxu0 0.0
    %1501 = vmatmul.mubr.f32.gmra.mxu0 %v1429
    %v1502 = vpop.f32.mrf.mxu0
    %v1503 = vadd.f32 0.0, %v1502
    %v1504 = vpop.f32.mrf.mxu0
    %1505 = vdwg.mxu0
    %v1506 = vsel %vm57, %v1255, 0.0
    %v1507 = vsel %vm57, %v1336, 0.0
    %v1508 = vadd.f32 %v1506, %v1507
    %v1509 = vsel %vm57, %v1417, 0.0
    %v1510 = vadd.f32 %v1508, %v1509
    %v1511 = vsel %vm57, %v1498, 0.0
    %v1512 = vadd.f32 %v1510, %v1511
    %v1513 = vsel %vm57, %v1260, 0.0
    %v1514 = vsel %vm57, %v1341, 0.0
    %v1515 = vadd.f32 %v1513, %v1514
    %v1516 = vsel %vm57, %v1422, 0.0
    %v1517 = vadd.f32 %v1515, %v1516
    %v1518 = vsel %vm57, %v1503, 0.0
    %v1519 = vadd.f32 %v1517, %v1518
    %v1520 = vld [vmem:[%s4] sm:$0x1]
    %v1522 = vlaneseq
    %v1523 = vshrl.u32 %v1522, 7
    %v1524 = vsub.s32 0, %v1523
    %v1525 = vrot.slane %v1520, %v1524
    %v1527 = vadd.f32 %v1512, %v1525
    %v1528 = vadd.f32 %v1519, %v1525
    %v1529 = vadd.f32 %v33, %v1527
    %v1530 = vadd.f32 %v34, %v1528
    %v1531 = vld [vmem:[%s5] sm:$0xff]
    %v1532 = vld [vmem:[%s5 + $0x8] sm:$0xff]
    %v1533 = vld [vmem:[%s5 + $0x10] sm:$0xff]
    %v1534 = vld [vmem:[%s5 + $0x18] sm:$0xff]
    %v1535 = vld [vmem:[%s6] sm:$0x1]
    %v1537 = vlaneseq
    %v1538 = vshrl.u32 %v1537, 7
    %v1539 = vsub.s32 0, %v1538
    %v1540 = vrot.slane %v1535, %v1539
    %v1543 = vsel %vm57, %v1529, 0
    %v1546 = vsel %vm57, %v1530, 0
    %1548 = vmatprep.subr.mxu0 0.0
    %1549 = vmatpush1.msra.mxu0 0.0
    %1550 = vmatprep.subr.mxu0 0.0
    %1551 = vmatpush1.msra.mxu0 0.0
    %1552 = vmatprep.subr.mxu0 0.0
    %1553 = vmatpush1.msra.mxu0 0.0
    %1554 = vmatprep.subr.mxu0 0.0
    %1555 = vmatpush1.msra.mxu0 0.0
    %1556 = vmatprep.subr.mxu0 0.0
    %1557 = vmatpush1.msra.mxu0 0.0
    %1558 = vmatprep.subr.mxu0 0.0
    %1559 = vmatpush1.msra.mxu0 0.0
    %1560 = vmatprep.subr.mxu0 0.0
    %1561 = vmatpush1.msra.mxu0 0.0
    %1562 = vmatprep.subr.mxu0 0.0
    %1563 = vmatpush1.msra.mxu0 0.0
    %1564 = vmatprep.subr.mxu0 0.0
    %1565 = vmatpush1.msra.mxu0 0.0
    %1566 = vmatprep.subr.mxu0 0.0
    %1567 = vmatpush1.msra.mxu0 0.0
    %1568 = vmatprep.subr.mxu0 0.0
    %1569 = vmatpush1.msra.mxu0 0.0
    %1570 = vmatprep.subr.mxu0 0.0
    %1571 = vmatpush1.msra.mxu0 0.0
    %1572 = vmatprep.subr.mxu0 0.0
    %1573 = vmatpush1.msra.mxu0 %v1534
    %1574 = vmatprep.subr.mxu0 0.0
    %1575 = vmatpush1.msra.mxu0 %v1533
    %1576 = vmatprep.subr.mxu0 0.0
    %1577 = vmatpush1.msra.mxu0 %v1532
    %1578 = vmatprep.subr.mxu0 0.0
    %1579 = vmatpush1.msra.mxu0 %v1531
    %1580 = vmatprep.subr.mxu0 0.0
    %1581 = vmatpush2.msra.mxu0 0.0
    %1582 = vmatprep.subr.mxu0 0.0
    %1583 = vmatpush2.msra.mxu0 0.0
    %1584 = vmatprep.subr.mxu0 0.0
    %1585 = vmatpush2.msra.mxu0 0.0
    %1586 = vmatprep.subr.mxu0 0.0
    %1587 = vmatpush2.msra.mxu0 0.0
    %1588 = vmatprep.subr.mxu0 0.0
    %1589 = vmatpush2.msra.mxu0 0.0
    %1590 = vmatprep.subr.mxu0 0.0
    %1591 = vmatpush2.msra.mxu0 0.0
    %1592 = vmatprep.subr.mxu0 0.0
    %1593 = vmatpush2.msra.mxu0 0.0
    %1594 = vmatprep.subr.mxu0 0.0
    %1595 = vmatpush2.msra.mxu0 0.0
    %1596 = vmatprep.subr.mxu0 0.0
    %1597 = vmatpush2.msra.mxu0 0.0
    %1598 = vmatprep.subr.mxu0 0.0
    %1599 = vmatpush2.msra.mxu0 0.0
    %1600 = vmatprep.subr.mxu0 0.0
    %1601 = vmatpush2.msra.mxu0 0.0
    %1602 = vmatprep.subr.mxu0 0.0
    %1603 = vmatpush2.msra.mxu0 0.0
    %1604 = vmatprep.subr.mxu0 0.0
    %1605 = vmatpush2.msra.mxu0 0.0
    %1606 = vmatprep.subr.mxu0 0.0
    %1607 = vmatpush2.msra.mxu0 0.0
    %1608 = vmatprep.subr.mxu0 0.0
    %1609 = vmatpush2.msra.mxu0 0.0
    %1610 = vmatprep.subr.mxu0 0.0
    %1611 = vmatpush2.msra.mxu0 0.0
    %1612 = vmatprep.mubr.f32.mxu0 0.0
    %1613 = vmatmul.mubr.f32.gmra.mxu0 %v1543
    %v1614 = vpop.f32.mrf.mxu0
    %v1615 = vadd.f32 %v1540, %v1614
    %v1616 = vpop.f32.mrf.mxu0
    %1617 = vmatprep.mubr.f32.mxu0 0.0
    %1618 = vmatmul.mubr.f32.gmra.mxu0 %v1546
    %v1619 = vpop.f32.mrf.mxu0
    %v1620 = vadd.f32 %v1540, %v1619
    %v1621 = vpop.f32.mrf.mxu0
    %1622 = vdwg.mxu0
    %v1623 = vmax.f32 %v1615, 0.0
    %v1624 = vmax.f32 %v1620, 0.0
    %v1625 = vld [vmem:[%s7] sm:$0xff]
    %v1626 = vld [vmem:[%s7 + $0x8] sm:$0xff]
    %v1627 = vld [vmem:[%s7 + $0x10] sm:$0xff]
    %v1628 = vld [vmem:[%s7 + $0x18] sm:$0xff]
    %v1629 = vld [vmem:[%s7 + $0x20] sm:$0xff]
    %v1630 = vld [vmem:[%s7 + $0x28] sm:$0xff]
    %v1631 = vld [vmem:[%s7 + $0x30] sm:$0xff]
    %v1632 = vld [vmem:[%s7 + $0x38] sm:$0xff]
    %v1633 = vld [vmem:[%s7 + $0x40] sm:$0xff]
    %v1634 = vld [vmem:[%s7 + $0x48] sm:$0xff]
    %v1635 = vld [vmem:[%s7 + $0x50] sm:$0xff]
    %v1636 = vld [vmem:[%s7 + $0x58] sm:$0xff]
    %v1637 = vld [vmem:[%s7 + $0x60] sm:$0xff]
    %v1638 = vld [vmem:[%s7 + $0x68] sm:$0xff]
    %v1639 = vld [vmem:[%s7 + $0x70] sm:$0xff]
    %v1640 = vld [vmem:[%s7 + $0x78] sm:$0xff]
    %v1641 = vld [vmem:[%s8] sm:$0x1]
    %v1643 = vlaneseq
    %v1644 = vshrl.u32 %v1643, 7
    %v1645 = vsub.s32 0, %v1644
    %v1646 = vrot.slane %v1641, %v1645
    %1648 = vmatprep.subr.mxu0 0.0
    %1649 = vmatpush1.msra.mxu0 %v1640
    %1650 = vmatprep.subr.mxu0 0.0
    %1651 = vmatpush1.msra.mxu0 %v1639
    %1652 = vmatprep.subr.mxu0 0.0
    %1653 = vmatpush1.msra.mxu0 %v1638
    %1654 = vmatprep.subr.mxu0 0.0
    %1655 = vmatpush1.msra.mxu0 %v1637
    %1656 = vmatprep.subr.mxu0 0.0
    %1657 = vmatpush1.msra.mxu0 %v1636
    %1658 = vmatprep.subr.mxu0 0.0
    %1659 = vmatpush1.msra.mxu0 %v1635
    %1660 = vmatprep.subr.mxu0 0.0
    %1661 = vmatpush1.msra.mxu0 %v1634
    %1662 = vmatprep.subr.mxu0 0.0
    %1663 = vmatpush1.msra.mxu0 %v1633
    %1664 = vmatprep.subr.mxu0 0.0
    %1665 = vmatpush1.msra.mxu0 %v1632
    %1666 = vmatprep.subr.mxu0 0.0
    %1667 = vmatpush1.msra.mxu0 %v1631
    %1668 = vmatprep.subr.mxu0 0.0
    %1669 = vmatpush1.msra.mxu0 %v1630
    %1670 = vmatprep.subr.mxu0 0.0
    %1671 = vmatpush1.msra.mxu0 %v1629
    %1672 = vmatprep.subr.mxu0 0.0
    %1673 = vmatpush1.msra.mxu0 %v1628
    %1674 = vmatprep.subr.mxu0 0.0
    %1675 = vmatpush1.msra.mxu0 %v1627
    %1676 = vmatprep.subr.mxu0 0.0
    %1677 = vmatpush1.msra.mxu0 %v1626
    %1678 = vmatprep.subr.mxu0 0.0
    %1679 = vmatpush1.msra.mxu0 %v1625
    %1680 = vmatprep.subr.mxu0 0.0
    %1681 = vmatpush2.msra.mxu0 0.0
    %1682 = vmatprep.subr.mxu0 0.0
    %1683 = vmatpush2.msra.mxu0 0.0
    %1684 = vmatprep.subr.mxu0 0.0
    %1685 = vmatpush2.msra.mxu0 0.0
    %1686 = vmatprep.subr.mxu0 0.0
    %1687 = vmatpush2.msra.mxu0 0.0
    %1688 = vmatprep.subr.mxu0 0.0
    %1689 = vmatpush2.msra.mxu0 0.0
    %1690 = vmatprep.subr.mxu0 0.0
    %1691 = vmatpush2.msra.mxu0 0.0
    %1692 = vmatprep.subr.mxu0 0.0
    %1693 = vmatpush2.msra.mxu0 0.0
    %1694 = vmatprep.subr.mxu0 0.0
    %1695 = vmatpush2.msra.mxu0 0.0
    %1696 = vmatprep.subr.mxu0 0.0
    %1697 = vmatpush2.msra.mxu0 0.0
    %1698 = vmatprep.subr.mxu0 0.0
    %1699 = vmatpush2.msra.mxu0 0.0
    %1700 = vmatprep.subr.mxu0 0.0
    %1701 = vmatpush2.msra.mxu0 0.0
    %1702 = vmatprep.subr.mxu0 0.0
    %1703 = vmatpush2.msra.mxu0 0.0
    %1704 = vmatprep.subr.mxu0 0.0
    %1705 = vmatpush2.msra.mxu0 0.0
    %1706 = vmatprep.subr.mxu0 0.0
    %1707 = vmatpush2.msra.mxu0 0.0
    %1708 = vmatprep.subr.mxu0 0.0
    %1709 = vmatpush2.msra.mxu0 0.0
    %1710 = vmatprep.subr.mxu0 0.0
    %1711 = vmatpush2.msra.mxu0 0.0
    %1712 = vmatprep.mubr.f32.mxu0 0.0
    %1713 = vmatmul.mubr.f32.gmra.mxu0 %v1623
    %v1714 = vpop.f32.mrf.mxu0
    %v1715 = vadd.f32 %v1646, %v1714
    %v1716 = vpop.f32.mrf.mxu0
    %1717 = vmatprep.mubr.f32.mxu0 0.0
    %1718 = vmatmul.mubr.f32.gmra.mxu0 %v1624
    %v1719 = vpop.f32.mrf.mxu0
    %v1720 = vadd.f32 %v1646, %v1719
    %v1721 = vpop.f32.mrf.mxu0
    %1722 = vdwg.mxu0
    %v1723 = vadd.f32 %v1529, %v1715
    %v1724 = vadd.f32 %v1530, %v1720
    %1725 = vst.msk [vmem:[#allocation2] sm:$0xff] %vm57, %v1723
    %1726 = vst.msk [vmem:[#allocation2 + $0x8] sm:$0xff] %vm57, %v1724
    // Predicated region
    $region38: #{tpu_custom_call.1} parent=1 // pred_check
      _
    $region39: #{tpu_custom_call.1} parent=1 // pred_check_branch
      %1728 = sbr.rel (0) target = $region41
    $region40: #{tpu_custom_call.1} parent=1 // pred_region
      %s1730 = ssub.s32 256, 256
      %1731 = vsyncadd [#allocation3], %s1730
      %s1732 = sshll.u32 [#allocation2], 4
      %s1733 = int_to_ptr.vmem [resolvable:$true] %s1732
      %1738 = dma.vmem_to_hbm [thread:$0]  %s1733, 256, %s9, [#allocation3], 128, 128, 8
    $region41: #{tpu_custom_call.1} parent=1 // pred_fallthru
      _
    // Predicated region
    $region42: #{tpu_custom_call.1} parent=1 // pred_check
      _
    $region43: #{tpu_custom_call.1} parent=1 // pred_check_branch
      %1740 = sbr.rel (0) target = $region45
    $region44: #{tpu_custom_call.1} parent=1 // pred_region
      %1741 = dma.done [#allocation3], 256
    $region45: #{tpu_custom_call.1} parent=1 // pred_fallthru
      _
    %1742 = vsyncpa [#allocation3], 1

</llo_original>
